<compile_context>
chip_gen: v5e
topology: v5e:2x2
jax: 0.10.0
libtpu: 0.0.40
codegen_flags: <defaults>
</compile_context>

<pallas_src>
import jax
import jax.numpy as jnp
from jax.experimental import pallas as pl
from jax.experimental.pallas import tpu as pltpu

HID_PAD = 128   # hidden dim 100 padded to 128 -> full-lane MXU tiles for both dots
OUT_PAD = 128   # output lanes padded to 128 -> unmasked (lane-dense) vector stores


def _round_up(x, m):
    return (x + m - 1) // m * m


def _linear_model_kernel(x1_ref, x2_ref, x3_ref,
                         w1a_ref, w1b_ref, w1c_ref,
                         b1_ref, w2_ref, out_ref):
    # First layer as three MXU dots (replaces the concat; no (B, 2400) copy in HBM).
    # x tiles arrive in their native dtype; the bf16 cast is a VPU op hidden under
    # the DMA. Accumulation is f32.
    h = jnp.dot(x1_ref[...].astype(jnp.bfloat16), w1a_ref[...],
                preferred_element_type=jnp.float32)
    h += jnp.dot(x2_ref[...].astype(jnp.bfloat16), w1b_ref[...],
                 preferred_element_type=jnp.float32)
    h += jnp.dot(x3_ref[...].astype(jnp.bfloat16), w1c_ref[...],
                 preferred_element_type=jnp.float32)
    a = jnp.tanh(h + b1_ref[...])            # bias add (VPU) + tanh (EUP) in f32
    # TODO(synk): nn.Dropout(p=0.5) is identity in eval mode; training-mode RNG masking omitted.
    # Second layer: bf16 operands, f32 MXU accumulation, bf16 store (halves the
    # padded-output HBM write).
    y = jnp.dot(a.astype(jnp.bfloat16), w2_ref[...],
                preferred_element_type=jnp.float32)
    out_ref[...] = y.astype(out_ref.dtype)


def linear_model_forward(x1, x2, x3, w1, b1, w2, *, block_b=1024):
    """Forward pass of LinearModel.

    x1/x2/x3: (B, d_i) with d1 + d2 + d3 == 2400.
    w1: (2400, 100)   (torch linear.weight transposed)
    b1: (100,) or (1, 100)
    w2: (100, n_out)  (torch linear2.weight transposed)
    """
    B = x1.shape[0]
    d1, d2, d3 = x1.shape[1], x2.shape[1], x3.shape[1]
    in_dim = d1 + d2 + d3
    hid = w1.shape[1]
    n_out = w2.shape[1]
    assert w1.shape[0] == in_dim and w2.shape[0] == hid

    # ---- parameter prep (zero padding keeps the result exact) ----
    w1p = jnp.zeros((in_dim, HID_PAD), jnp.float32).at[:, :hid].set(w1).astype(jnp.bfloat16)
    w1a, w1b, w1c = w1p[:d1], w1p[d1:d1 + d2], w1p[d1 + d2:]
    b1p = jnp.zeros((1, HID_PAD), jnp.float32).at[0, :hid].set(jnp.reshape(b1, (-1,)))
    w2p = (jnp.zeros((HID_PAD, OUT_PAD), jnp.float32)
           .at[:hid, :n_out].set(w2).astype(jnp.bfloat16))

    # ---- batch tiling ----
    # Pad the batch only to a multiple of 8 (sublane requirement); the last grid
    # tile is allowed to overhang — Pallas clips the final partial read/write, and
    # overhang rows never feed a cross-row reduction, so they are simply discarded
    # by the wrapper slice below.
    b8 = _round_up(max(B, 8), 8)
    if b8 != B:
        pad = [(0, b8 - B), (0, 0)]
        x1 = jnp.pad(x1, pad)
        x2 = jnp.pad(x2, pad)
        x3 = jnp.pad(x3, pad)

    # Tile choice: as big as block_b allows, but split into >= 2 tiles when the
    # batch is large enough so both v7x TensorCores get work via "parallel".
    tb = min(block_b, max(8, _round_up(pl.cdiv(b8, 2), 8)))
    grid = (pl.cdiv(b8, tb),)

    def x_spec(d):
        return pl.BlockSpec((tb, d), lambda i: (i, 0))

    def w_spec(shape):
        return pl.BlockSpec(shape, lambda i: (0, 0))   # resident across all grid steps

    x_bytes = x1.dtype.itemsize
    flops = 2 * b8 * in_dim * HID_PAD + 2 * b8 * HID_PAD * OUT_PAD
    bytes_accessed = (b8 * in_dim * x_bytes          # x chunks (native dtype)
                      + in_dim * HID_PAD * 2         # W1 (bf16)
                      + HID_PAD * OUT_PAD * 2        # W2 (bf16)
                      + HID_PAD * 4                  # b1 (f32)
                      + b8 * OUT_PAD * 2)            # output (bf16)

    out = pl.pallas_call(
        _linear_model_kernel,
        out_shape=jax.ShapeDtypeStruct((b8, OUT_PAD), jnp.bfloat16),
        grid=grid,
        in_specs=[
            x_spec(d1), x_spec(d2), x_spec(d3),
            w_spec((d1, HID_PAD)), w_spec((d2, HID_PAD)), w_spec((d3, HID_PAD)),
            w_spec((1, HID_PAD)), w_spec((HID_PAD, OUT_PAD)),
        ],
        out_specs=pl.BlockSpec((tb, OUT_PAD), lambda i: (i, 0)),
        compiler_params=pltpu.CompilerParams(
            dimension_semantics=("parallel",),     # batch tiles are independent (v7x: 2 TCs)
            vmem_limit_bytes=48 << 20,             # ~20 MiB actual use; headroom on v7x 64 MiB
        ),
        cost_estimate=pl.CostEstimate(
            flops=flops,
            transcendentals=b8 * HID_PAD,
            bytes_accessed=bytes_accessed,
        ),
    )(x1, x2, x3, w1a, w1b, w1c, b1p, w2p)

    return out[:B, :n_out].astype(jnp.float32)


if __name__ == "__main__":
    # Deterministic synthetic parameters (shapes from the module __init__).
    # label set of size 5 -> output dim = 1 + 2*5 = 11.
    n_label = 5
    in_dim, hid_dim, out_dim = 2400, 100, 1 + 2 * n_label
    B = 8

    key = jax.random.PRNGKey(0)
    k_x1, k_x2, k_x3, k_w1, k_b1, k_w2 = jax.random.split(key, 6)

    # PyTorch-style uniform init bounds: U(-1/sqrt(fan_in), 1/sqrt(fan_in)).
    bound1 = 1.0 / jnp.sqrt(in_dim)
    bound2 = 1.0 / jnp.sqrt(hid_dim)
    w1 = jax.random.uniform(k_w1, (in_dim, hid_dim), jnp.float32, -bound1, bound1)
    b1 = jax.random.uniform(k_b1, (1, hid_dim), jnp.float32, -bound1, bound1)
    w2 = jax.random.uniform(k_w2, (hid_dim, out_dim), jnp.float32, -bound2, bound2)

    # The three concatenated embedding chunks (word/pos/label features), summing to 2400.
    x1 = jax.random.normal(k_x1, (B, 900), jnp.float32)
    x2 = jax.random.normal(k_x2, (B, 900), jnp.float32)
    x3 = jax.random.normal(k_x3, (B, 600), jnp.float32)

    out = linear_model_forward(x1, x2, x3, w1, b1, w2)
    out = jax.block_until_ready(out)

    # Pure-JAX f32 reference check (tolerance loosened for bf16 operands / bf16 output).
    x_cat = jnp.concatenate([x1, x2, x3], axis=1)
    ref = jnp.tanh(x_cat @ w1 + b1) @ w2
    assert out.shape == (B, out_dim)
    assert jnp.allclose(out, ref, atol=3e-2, rtol=3e-2), float(jnp.max(jnp.abs(out - ref)))

    print("KERNEL_OK")
</pallas_src>

<mosaic_0001>
module attributes {stable_mosaic.version = 11 : i64} {
  func.func @_linear_model_kernel(%arg0: i32, %arg1: memref<8x900xf32, #tpu.memory_space<vmem>>, %arg2: memref<8x900xf32, #tpu.memory_space<vmem>>, %arg3: memref<8x600xf32, #tpu.memory_space<vmem>>, %arg4: memref<900x128xbf16, #tpu.memory_space<vmem>>, %arg5: memref<900x128xbf16, #tpu.memory_space<vmem>>, %arg6: memref<600x128xbf16, #tpu.memory_space<vmem>>, %arg7: memref<1x128xf32, #tpu.memory_space<vmem>>, %arg8: memref<128x128xbf16, #tpu.memory_space<vmem>>, %arg9: memref<8x128xbf16, #tpu.memory_space<vmem>>) attributes {dimension_semantics = [#tpu.dimension_semantics<parallel>], iteration_bounds = array<i64: 1>, scalar_prefetch = 0 : i64, scratch_operands = 0 : i64, tpu.core_type = #tpu.core_type<tc>, window_params = [{transform_indices = @transform_0, window_bounds = array<i64: 8, 900>}, {transform_indices = @transform_1, window_bounds = array<i64: 8, 900>}, {transform_indices = @transform_2, window_bounds = array<i64: 8, 600>}, {pipeline_mode = #tpu.pipeline_mode<synchronous>, transform_indices = @transform_3, window_bounds = array<i64: 900, 128>}, {pipeline_mode = #tpu.pipeline_mode<synchronous>, transform_indices = @transform_4, window_bounds = array<i64: 900, 128>}, {pipeline_mode = #tpu.pipeline_mode<synchronous>, transform_indices = @transform_5, window_bounds = array<i64: 600, 128>}, {pipeline_mode = #tpu.pipeline_mode<synchronous>, transform_indices = @transform_6, window_bounds = array<i64: 1, 128>}, {pipeline_mode = #tpu.pipeline_mode<synchronous>, transform_indices = @transform_7, window_bounds = array<i64: 128, 128>}, {transform_indices = @transform_8, window_bounds = array<i64: 8, 128>}]} {
    %c0 = arith.constant 0 : index
    %c0_0 = arith.constant 0 : index
    %0 = vector.load %arg1[%c0, %c0_0] : memref<8x900xf32, #tpu.memory_space<vmem>>, vector<8x900xf32>
    %1 = arith.truncf %0 : vector<8x900xf32> to vector<8x900xbf16>
    %c0_1 = arith.constant 0 : index
    %c0_2 = arith.constant 0 : index
    %2 = vector.load %arg4[%c0_1, %c0_2] : memref<900x128xbf16, #tpu.memory_space<vmem>>, vector<900x128xbf16>
    %cst = arith.constant dense<0.000000e+00> : vector<8x128xf32>
    %3 = tpu.matmul %1, %2, %cst {dimension_numbers = #tpu.dot_dimension_numbers<[1], [0], [0], [1], [0, 0, 1, 1], [], []>} : vector<8x900xbf16>, vector<900x128xbf16>, vector<8x128xf32> -> vector<8x128xf32>
    %c0_3 = arith.constant 0 : index
    %c0_4 = arith.constant 0 : index
    %4 = vector.load %arg2[%c0_3, %c0_4] : memref<8x900xf32, #tpu.memory_space<vmem>>, vector<8x900xf32>
    %5 = arith.truncf %4 : vector<8x900xf32> to vector<8x900xbf16>
    %c0_5 = arith.constant 0 : index
    %c0_6 = arith.constant 0 : index
    %6 = vector.load %arg5[%c0_5, %c0_6] : memref<900x128xbf16, #tpu.memory_space<vmem>>, vector<900x128xbf16>
    %cst_7 = arith.constant dense<0.000000e+00> : vector<8x128xf32>
    %7 = tpu.matmul %5, %6, %cst_7 {dimension_numbers = #tpu.dot_dimension_numbers<[1], [0], [0], [1], [0, 0, 1, 1], [], []>} : vector<8x900xbf16>, vector<900x128xbf16>, vector<8x128xf32> -> vector<8x128xf32>
    %8 = arith.addf %3, %7 : vector<8x128xf32>
    %c0_8 = arith.constant 0 : index
    %c0_9 = arith.constant 0 : index
    %9 = vector.load %arg3[%c0_8, %c0_9] : memref<8x600xf32, #tpu.memory_space<vmem>>, vector<8x600xf32>
    %10 = arith.truncf %9 : vector<8x600xf32> to vector<8x600xbf16>
    %c0_10 = arith.constant 0 : index
    %c0_11 = arith.constant 0 : index
    %11 = vector.load %arg6[%c0_10, %c0_11] : memref<600x128xbf16, #tpu.memory_space<vmem>>, vector<600x128xbf16>
    %cst_12 = arith.constant dense<0.000000e+00> : vector<8x128xf32>
    %12 = tpu.matmul %10, %11, %cst_12 {dimension_numbers = #tpu.dot_dimension_numbers<[1], [0], [0], [1], [0, 0, 1, 1], [], []>} : vector<8x600xbf16>, vector<600x128xbf16>, vector<8x128xf32> -> vector<8x128xf32>
    %13 = arith.addf %8, %12 : vector<8x128xf32>
    %c0_13 = arith.constant 0 : index
    %c0_14 = arith.constant 0 : index
    %14 = vector.load %arg7[%c0_13, %c0_14] : memref<1x128xf32, #tpu.memory_space<vmem>>, vector<1x128xf32>
    %15 = vector.broadcast %14 : vector<1x128xf32> to vector<8x128xf32>
    %16 = arith.addf %13, %15 : vector<8x128xf32>
    %17 = math.tanh %16 : vector<8x128xf32>
    %18 = arith.truncf %17 : vector<8x128xf32> to vector<8x128xbf16>
    %c0_15 = arith.constant 0 : index
    %c0_16 = arith.constant 0 : index
    %19 = vector.load %arg8[%c0_15, %c0_16] : memref<128x128xbf16, #tpu.memory_space<vmem>>, vector<128x128xbf16>
    %cst_17 = arith.constant dense<0.000000e+00> : vector<8x128xf32>
    %20 = tpu.matmul %18, %19, %cst_17 {dimension_numbers = #tpu.dot_dimension_numbers<[1], [0], [0], [1], [0, 0, 1, 1], [], []>} : vector<8x128xbf16>, vector<128x128xbf16>, vector<8x128xf32> -> vector<8x128xf32>
    %21 = arith.truncf %20 : vector<8x128xf32> to vector<8x128xbf16>
    %c0_18 = arith.constant 0 : index
    %c0_19 = arith.constant 0 : index
    %22 = vector.load %arg9[%c0_18, %c0_19] : memref<8x128xbf16, #tpu.memory_space<vmem>>, vector<8x128xbf16>
    tpu.vector_store %arg9[%c0_18, %c0_19], %21 {strides = array<i32>} : memref<8x128xbf16, #tpu.memory_space<vmem>>, vector<8x128xbf16>,
    return
  }
  func.func @transform_0(%arg0: i32) -> (i32, i32) {
    %c0_i32 = arith.constant 0 : i32
    %c0_i32_0 = arith.constant 0 : i32
    return %arg0, %c0_i32 : i32, i32
  }
  func.func @transform_1(%arg0: i32) -> (i32, i32) {
    %c0_i32 = arith.constant 0 : i32
    %c0_i32_0 = arith.constant 0 : i32
    return %arg0, %c0_i32 : i32, i32
  }
  func.func @transform_2(%arg0: i32) -> (i32, i32) {
    %c0_i32 = arith.constant 0 : i32
    %c0_i32_0 = arith.constant 0 : i32
    return %arg0, %c0_i32 : i32, i32
  }
  func.func @transform_3(%arg0: i32) -> (i32, i32) {
    %c0_i32 = arith.constant 0 : i32
    %c0_i32_0 = arith.constant 0 : i32
    %c0_i32_1 = arith.constant 0 : i32
    return %c0_i32, %c0_i32_0 : i32, i32
  }
  func.func @transform_4(%arg0: i32) -> (i32, i32) {
    %c0_i32 = arith.constant 0 : i32
    %c0_i32_0 = arith.constant 0 : i32
    %c0_i32_1 = arith.constant 0 : i32
    return %c0_i32, %c0_i32_0 : i32, i32
  }
  func.func @transform_5(%arg0: i32) -> (i32, i32) {
    %c0_i32 = arith.constant 0 : i32
    %c0_i32_0 = arith.constant 0 : i32
    %c0_i32_1 = arith.constant 0 : i32
    return %c0_i32, %c0_i32_0 : i32, i32
  }
  func.func @transform_6(%arg0: i32) -> (i32, i32) {
    %c0_i32 = arith.constant 0 : i32
    %c0_i32_0 = arith.constant 0 : i32
    %c0_i32_1 = arith.constant 0 : i32
    return %c0_i32, %c0_i32_0 : i32, i32
  }
  func.func @transform_7(%arg0: i32) -> (i32, i32) {
    %c0_i32 = arith.constant 0 : i32
    %c0_i32_0 = arith.constant 0 : i32
    %c0_i32_1 = arith.constant 0 : i32
    return %c0_i32, %c0_i32_0 : i32, i32
  }
  func.func @transform_8(%arg0: i32) -> (i32, i32) {
    %c0_i32 = arith.constant 0 : i32
    %c0_i32_0 = arith.constant 0 : i32
    return %arg0, %c0_i32 : i32, i32
  }
}

</mosaic_0001>

<llo_original>
// kernel: tpu_custom_call.1
$region0: #{tpu_custom_call.1}
  #allocation0 [shape = 'u32[]', space=smem, size = 0x4, offset = 0x4, fixed_abs, tag = 'smem constant byte address 0x4 - core index']
  #allocation1 [shape = 'u32[72,128]{1,0:T(1,128)}', space=vmem, size = 0x9000, scoped, tag = 'internal scratch']
  %s0 = inlined_call_operand.hbm [shape: f32[8,900], index: 0, kind: input, shape index: {}]
  %s1 = inlined_call_operand.hbm [shape: f32[8,900], index: 1, kind: input, shape index: {}]
  %s2 = inlined_call_operand.hbm [shape: f32[8,600], index: 2, kind: input, shape index: {}]
  %s3 = inlined_call_operand.hbm [shape: bf16[900,128], index: 3, kind: input, shape index: {}]
  %s4 = inlined_call_operand.hbm [shape: bf16[900,128], index: 4, kind: input, shape index: {}]
  %s5 = inlined_call_operand.hbm [shape: bf16[600,128], index: 5, kind: input, shape index: {}]
  %s6 = inlined_call_operand.vmem [shape: f32[1,128], index: 6, kind: input, shape index: {}]
  %s7 = inlined_call_operand.hbm [shape: bf16[128,128], index: 7, kind: input, shape index: {}]
  %s8 = inlined_call_operand.hbm [shape: bf16[8,128], index: 8, kind: output, shape index: {}]
  %s9 = sld [smem:[#allocation0]]
  $region70: #{tpu_custom_call.1} parent=0
    _
  %s11 = ssub.s32 1, %s9
  %s12 = scalar_select 0, %s11, %s9
  $region1: #{tpu_custom_call.1} parent=0
    #allocation2 [shape = 'u8[32768]{0}', space=vmem, size = 0x8000, scoped, tag = 'input window, operand 0, single buffered']
    #allocation3 [shape = 's32[1]{0}', space=sflag, size = 0x4, scoped, tag = 'scoped memory for tpu_custom_call.1']
    #allocation4 [shape = 's32[1]{0}', space=sflag, size = 0x4, scoped, tag = 'scoped memory for tpu_custom_call.1']
    #allocation5 [shape = 'u8[32768]{0}', space=vmem, size = 0x8000, scoped, tag = 'input window, operand 1, single buffered']
    #allocation6 [shape = 's32[1]{0}', space=sflag, size = 0x4, scoped, tag = 'scoped memory for tpu_custom_call.1']
    #allocation7 [shape = 'u8[20480]{0}', space=vmem, size = 0x5000, scoped, tag = 'input window, operand 2, single buffered']
    #allocation8 [shape = 'u8[231424]{0}', space=vmem, size = 0x38800, scoped, tag = 'input window, operand 3, single buffered']
    #allocation9 [shape = 's32[1]{0}', space=sflag, size = 0x4, scoped, tag = 'scoped memory for tpu_custom_call.1']
    #allocation10 [shape = 'u8[231424]{0}', space=vmem, size = 0x38800, scoped, tag = 'input window, operand 4, single buffered']
    #allocation11 [shape = 'u8[153600]{0}', space=vmem, size = 0x25800, scoped, tag = 'input window, operand 5, single buffered']
    #allocation12 [shape = 's32[1]{0}', space=sflag, size = 0x4, scoped, tag = 'scoped memory for tpu_custom_call.1']
    #allocation13 [shape = 'u8[32768]{0}', space=vmem, size = 0x8000, scoped, tag = 'input window, operand 7, single buffered']
    #allocation14 [shape = 'u8[2048]{0}', space=vmem, size = 0x800, scoped, tag = 'output window, operand 0, single buffered']
    %13 = vsyncpa [#allocation3], 0
    %14 = vsyncpa [#allocation6], 0
    %15 = vsyncpa [#allocation9], 0
    %16 = vsyncpa [#allocation12], 0
    %17 = vsyncpa [#allocation4], 0
    // Predicated region
    $region2: #{tpu_custom_call.1} parent=1 // pred_check
      _
    $region3: #{tpu_custom_call.1} parent=1 // pred_check_branch
      %19 = sbr.rel (0) target = $region5
    $region4: #{tpu_custom_call.1} parent=1 // pred_region
      %21 = vsyncadd [#allocation3], 0
      %s23 = sshll.u32 %s0, 4
      %s24 = int_to_ptr.hbm [resolvable:$true] %s23
      %s25 = sshll.u32 [#allocation2], 4
      %s26 = int_to_ptr.vmem [resolvable:$true] %s25
      %28 = dma.hbm_to_vmem [thread:$0]  %s24, 1024, %s26, [#allocation3]
    $region5: #{tpu_custom_call.1} parent=1 // pred_fallthru
      _
    // Predicated region
    $region6: #{tpu_custom_call.1} parent=1 // pred_check
      _
    $region7: #{tpu_custom_call.1} parent=1 // pred_check_branch
      %30 = sbr.rel (0) target = $region9
    $region8: #{tpu_custom_call.1} parent=1 // pred_region
      %32 = vsyncadd [#allocation6], 0
      %s34 = sshll.u32 %s1, 4
      %s35 = int_to_ptr.hbm [resolvable:$true] %s34
      %s36 = sshll.u32 [#allocation5], 4
      %s37 = int_to_ptr.vmem [resolvable:$true] %s36
      %39 = dma.hbm_to_vmem [thread:$0]  %s35, 1024, %s37, [#allocation6]
    $region9: #{tpu_custom_call.1} parent=1 // pred_fallthru
      _
    // Predicated region
    $region10: #{tpu_custom_call.1} parent=1 // pred_check
      _
    $region11: #{tpu_custom_call.1} parent=1 // pred_check_branch
      %41 = sbr.rel (0) target = $region13
    $region12: #{tpu_custom_call.1} parent=1 // pred_region
      %43 = vsyncadd [#allocation6], 0
      %s45 = sshll.u32 %s2, 4
      %s46 = int_to_ptr.hbm [resolvable:$true] %s45
      %s47 = sshll.u32 [#allocation7], 4
      %s48 = int_to_ptr.vmem [resolvable:$true] %s47
      %50 = dma.hbm_to_vmem [thread:$0]  %s46, 640, %s48, [#allocation6]
    $region13: #{tpu_custom_call.1} parent=1 // pred_fallthru
      _
    // Predicated region
    $region14: #{tpu_custom_call.1} parent=1 // pred_check
      _
    $region15: #{tpu_custom_call.1} parent=1 // pred_check_branch
      %52 = sbr.rel (0) target = $region17
    $region16: #{tpu_custom_call.1} parent=1 // pred_region
      %54 = vsyncadd [#allocation9], 0
      %s55 = sshll.u32 %s3, 4
      %s56 = int_to_ptr.hbm [resolvable:$true] %s55
      %s57 = sshll.u32 [#allocation8], 4
      %s58 = int_to_ptr.vmem [resolvable:$true] %s57
      %63 = dma.hbm_to_vmem [thread:$0]  %s56, 7232, %s58, [#allocation9], 64, 64, 4
    $region17: #{tpu_custom_call.1} parent=1 // pred_fallthru
      _
    // Predicated region
    $region18: #{tpu_custom_call.1} parent=1 // pred_check
      _
    $region19: #{tpu_custom_call.1} parent=1 // pred_check_branch
      %65 = sbr.rel (0) target = $region21
    $region20: #{tpu_custom_call.1} parent=1 // pred_region
      %67 = vsyncadd [#allocation9], 0
      %s68 = sshll.u32 %s4, 4
      %s69 = int_to_ptr.hbm [resolvable:$true] %s68
      %s70 = sshll.u32 [#allocation10], 4
      %s71 = int_to_ptr.vmem [resolvable:$true] %s70
      %76 = dma.hbm_to_vmem [thread:$0]  %s69, 7232, %s71, [#allocation9], 64, 64, 4
    $region21: #{tpu_custom_call.1} parent=1 // pred_fallthru
      _
    // Predicated region
    $region22: #{tpu_custom_call.1} parent=1 // pred_check
      _
    $region23: #{tpu_custom_call.1} parent=1 // pred_check_branch
      %78 = sbr.rel (0) target = $region25
    $region24: #{tpu_custom_call.1} parent=1 // pred_region
      %80 = vsyncadd [#allocation12], 0
      %s81 = sshll.u32 %s5, 4
      %s82 = int_to_ptr.hbm [resolvable:$true] %s81
      %s83 = sshll.u32 [#allocation11], 4
      %s84 = int_to_ptr.vmem [resolvable:$true] %s83
      %89 = dma.hbm_to_vmem [thread:$0]  %s82, 4800, %s84, [#allocation12], 64, 64, 4
    $region25: #{tpu_custom_call.1} parent=1 // pred_fallthru
      _
    // Predicated region
    $region26: #{tpu_custom_call.1} parent=1 // pred_check
      _
    $region27: #{tpu_custom_call.1} parent=1 // pred_check_branch
      %91 = sbr.rel (0) target = $region29
    $region28: #{tpu_custom_call.1} parent=1 // pred_region
      _
    $region29: #{tpu_custom_call.1} parent=1 // pred_fallthru
      _
    // Predicated region
    $region30: #{tpu_custom_call.1} parent=1 // pred_check
      _
    $region31: #{tpu_custom_call.1} parent=1 // pred_check_branch
      %93 = sbr.rel (0) target = $region33
    $region32: #{tpu_custom_call.1} parent=1 // pred_region
      %95 = vsyncadd [#allocation12], 0
      %s96 = sshll.u32 %s7, 4
      %s97 = int_to_ptr.hbm [resolvable:$true] %s96
      %s98 = sshll.u32 [#allocation13], 4
      %s99 = int_to_ptr.vmem [resolvable:$true] %s98
      %104 = dma.hbm_to_vmem [thread:$0]  %s97, 1024, %s99, [#allocation12], 64, 64, 4
    $region33: #{tpu_custom_call.1} parent=1 // pred_fallthru
      _
    // Predicated region
    $region34: #{tpu_custom_call.1} parent=1 // pred_check
      _
    $region35: #{tpu_custom_call.1} parent=1 // pred_check_branch
      %106 = sbr.rel (0) target = $region37
    $region36: #{tpu_custom_call.1} parent=1 // pred_region
      %108 = dma.done [#allocation3], 1024
    $region37: #{tpu_custom_call.1} parent=1 // pred_fallthru
      _
    // Predicated region
    $region38: #{tpu_custom_call.1} parent=1 // pred_check
      _
    $region39: #{tpu_custom_call.1} parent=1 // pred_check_branch
      %110 = sbr.rel (0) target = $region41
    $region40: #{tpu_custom_call.1} parent=1 // pred_region
      %112 = dma.done [#allocation6], 1024
    $region41: #{tpu_custom_call.1} parent=1 // pred_fallthru
      _
    // Predicated region
    $region42: #{tpu_custom_call.1} parent=1 // pred_check
      _
    $region43: #{tpu_custom_call.1} parent=1 // pred_check_branch
      %114 = sbr.rel (0) target = $region45
    $region44: #{tpu_custom_call.1} parent=1 // pred_region
      %116 = dma.done [#allocation6], 640
    $region45: #{tpu_custom_call.1} parent=1 // pred_fallthru
      _
    // Predicated region
    $region46: #{tpu_custom_call.1} parent=1 // pred_check
      _
    $region47: #{tpu_custom_call.1} parent=1 // pred_check_branch
      %118 = sbr.rel (0) target = $region49
    $region48: #{tpu_custom_call.1} parent=1 // pred_region
      %120 = dma.done [#allocation9], 7232
    $region49: #{tpu_custom_call.1} parent=1 // pred_fallthru
      _
    // Predicated region
    $region50: #{tpu_custom_call.1} parent=1 // pred_check
      _
    $region51: #{tpu_custom_call.1} parent=1 // pred_check_branch
      %122 = sbr.rel (0) target = $region53
    $region52: #{tpu_custom_call.1} parent=1 // pred_region
      %124 = dma.done [#allocation9], 7232
    $region53: #{tpu_custom_call.1} parent=1 // pred_fallthru
      _
    // Predicated region
    $region54: #{tpu_custom_call.1} parent=1 // pred_check
      _
    $region55: #{tpu_custom_call.1} parent=1 // pred_check_branch
      %126 = sbr.rel (0) target = $region57
    $region56: #{tpu_custom_call.1} parent=1 // pred_region
      %128 = dma.done [#allocation12], 4800
    $region57: #{tpu_custom_call.1} parent=1 // pred_fallthru
      _
    // Predicated region
    $region58: #{tpu_custom_call.1} parent=1 // pred_check
      _
    $region59: #{tpu_custom_call.1} parent=1 // pred_check_branch
      %130 = sbr.rel (0) target = $region61
    $region60: #{tpu_custom_call.1} parent=1 // pred_region
      %132 = dma.done [#allocation12], 1024
    $region61: #{tpu_custom_call.1} parent=1 // pred_fallthru
      _
    %v134 = vld [vmem:[#allocation2] sm:$0xff]
    %v135 = vld [vmem:[#allocation2 + $0x8] sm:$0xff]
    %v136 = vld [vmem:[#allocation2 + $0x10] sm:$0xff]
    %v137 = vld [vmem:[#allocation2 + $0x18] sm:$0xff]
    %v138 = vld [vmem:[#allocation2 + $0x20] sm:$0xff]
    %v139 = vld [vmem:[#allocation2 + $0x28] sm:$0xff]
    %v140 = vld [vmem:[#allocation2 + $0x30] sm:$0xff]
    %v141 = vld [vmem:[#allocation2 + $0x38] sm:$0xff]
    %v142 = vpack.c.bf16 %v134, %v134
    %v143 = vpack.c.bf16 %v135, %v135
    %v144 = vpack.c.bf16 %v136, %v136
    %v145 = vpack.c.bf16 %v137, %v137
    %v146 = vpack.c.bf16 %v138, %v138
    %v147 = vpack.c.bf16 %v139, %v139
    %v148 = vpack.c.bf16 %v140, %v140
    %v149 = vpack.c.bf16 %v141, %v141
    %v150 = vld [vmem:[#allocation8] sm:$0xf]
    %v151 = vld [vmem:[#allocation8 + $0x4] sm:$0xf]
    %v152 = vld [vmem:[#allocation8 + $0x8] sm:$0xf]
    %v153 = vld [vmem:[#allocation8 + $0xc] sm:$0xf]
    %v154 = vld [vmem:[#allocation8 + $0x10] sm:$0xf]
    %v155 = vld [vmem:[#allocation8 + $0x14] sm:$0xf]
    %v156 = vld [vmem:[#allocation8 + $0x18] sm:$0xf]
    %v157 = vld [vmem:[#allocation8 + $0x1c] sm:$0xf]
    %v158 = vld [vmem:[#allocation8 + $0x20] sm:$0xf]
    %v159 = vld [vmem:[#allocation8 + $0x24] sm:$0xf]
    %v160 = vld [vmem:[#allocation8 + $0x28] sm:$0xf]
    %v161 = vld [vmem:[#allocation8 + $0x2c] sm:$0xf]
    %v162 = vld [vmem:[#allocation8 + $0x30] sm:$0xf]
    %v163 = vld [vmem:[#allocation8 + $0x34] sm:$0xf]
    %v164 = vld [vmem:[#allocation8 + $0x38] sm:$0xf]
    %v165 = vld [vmem:[#allocation8 + $0x3c] sm:$0xf]
    %v166 = vld [vmem:[#allocation8 + $0x40] sm:$0xf]
    %v167 = vld [vmem:[#allocation8 + $0x44] sm:$0xf]
    %v168 = vld [vmem:[#allocation8 + $0x48] sm:$0xf]
    %v169 = vld [vmem:[#allocation8 + $0x4c] sm:$0xf]
    %v170 = vld [vmem:[#allocation8 + $0x50] sm:$0xf]
    %v171 = vld [vmem:[#allocation8 + $0x54] sm:$0xf]
    %v172 = vld [vmem:[#allocation8 + $0x58] sm:$0xf]
    %v173 = vld [vmem:[#allocation8 + $0x5c] sm:$0xf]
    %v174 = vld [vmem:[#allocation8 + $0x60] sm:$0xf]
    %v175 = vld [vmem:[#allocation8 + $0x64] sm:$0xf]
    %v176 = vld [vmem:[#allocation8 + $0x68] sm:$0xf]
    %v177 = vld [vmem:[#allocation8 + $0x6c] sm:$0xf]
    %v178 = vld [vmem:[#allocation8 + $0x70] sm:$0xf]
    %v179 = vld [vmem:[#allocation8 + $0x74] sm:$0xf]
    %v180 = vld [vmem:[#allocation8 + $0x78] sm:$0xf]
    %v181 = vld [vmem:[#allocation8 + $0x7c] sm:$0xf]
    %v182 = vld [vmem:[#allocation8 + $0x80] sm:$0xf]
    %v183 = vld [vmem:[#allocation8 + $0x84] sm:$0xf]
    %v184 = vld [vmem:[#allocation8 + $0x88] sm:$0xf]
    %v185 = vld [vmem:[#allocation8 + $0x8c] sm:$0xf]
    %v186 = vld [vmem:[#allocation8 + $0x90] sm:$0xf]
    %v187 = vld [vmem:[#allocation8 + $0x94] sm:$0xf]
    %v188 = vld [vmem:[#allocation8 + $0x98] sm:$0xf]
    %v189 = vld [vmem:[#allocation8 + $0x9c] sm:$0xf]
    %v190 = vld [vmem:[#allocation8 + $0xa0] sm:$0xf]
    %v191 = vld [vmem:[#allocation8 + $0xa4] sm:$0xf]
    %v192 = vld [vmem:[#allocation8 + $0xa8] sm:$0xf]
    %v193 = vld [vmem:[#allocation8 + $0xac] sm:$0xf]
    %v194 = vld [vmem:[#allocation8 + $0xb0] sm:$0xf]
    %v195 = vld [vmem:[#allocation8 + $0xb4] sm:$0xf]
    %v196 = vld [vmem:[#allocation8 + $0xb8] sm:$0xf]
    %v197 = vld [vmem:[#allocation8 + $0xbc] sm:$0xf]
    %v198 = vld [vmem:[#allocation8 + $0xc0] sm:$0xf]
    %v199 = vld [vmem:[#allocation8 + $0xc4] sm:$0xf]
    %v200 = vld [vmem:[#allocation8 + $0xc8] sm:$0xf]
    %v201 = vld [vmem:[#allocation8 + $0xcc] sm:$0xf]
    %v202 = vld [vmem:[#allocation8 + $0xd0] sm:$0xf]
    %v203 = vld [vmem:[#allocation8 + $0xd4] sm:$0xf]
    %v204 = vld [vmem:[#allocation8 + $0xd8] sm:$0xf]
    %v205 = vld [vmem:[#allocation8 + $0xdc] sm:$0xf]
    %v206 = vld [vmem:[#allocation8 + $0xe0] sm:$0xf]
    %v207 = vld [vmem:[#allocation8 + $0xe4] sm:$0xf]
    %v208 = vld [vmem:[#allocation8 + $0xe8] sm:$0xf]
    %v209 = vld [vmem:[#allocation8 + $0xec] sm:$0xf]
    %v210 = vld [vmem:[#allocation8 + $0xf0] sm:$0xf]
    %v211 = vld [vmem:[#allocation8 + $0xf4] sm:$0xf]
    %v212 = vld [vmem:[#allocation8 + $0xf8] sm:$0xf]
    %v213 = vld [vmem:[#allocation8 + $0xfc] sm:$0xf]
    %v214 = vld [vmem:[#allocation8 + $0x100] sm:$0xf]
    %v215 = vld [vmem:[#allocation8 + $0x104] sm:$0xf]
    %v216 = vld [vmem:[#allocation8 + $0x108] sm:$0xf]
    %v217 = vld [vmem:[#allocation8 + $0x10c] sm:$0xf]
    %v218 = vld [vmem:[#allocation8 + $0x110] sm:$0xf]
    %v219 = vld [vmem:[#allocation8 + $0x114] sm:$0xf]
    %v220 = vld [vmem:[#allocation8 + $0x118] sm:$0xf]
    %v221 = vld [vmem:[#allocation8 + $0x11c] sm:$0xf]
    %v222 = vld [vmem:[#allocation8 + $0x120] sm:$0xf]
    %v223 = vld [vmem:[#allocation8 + $0x124] sm:$0xf]
    %v224 = vld [vmem:[#allocation8 + $0x128] sm:$0xf]
    %v225 = vld [vmem:[#allocation8 + $0x12c] sm:$0xf]
    %v226 = vld [vmem:[#allocation8 + $0x130] sm:$0xf]
    %v227 = vld [vmem:[#allocation8 + $0x134] sm:$0xf]
    %v228 = vld [vmem:[#allocation8 + $0x138] sm:$0xf]
    %v229 = vld [vmem:[#allocation8 + $0x13c] sm:$0xf]
    %v230 = vld [vmem:[#allocation8 + $0x140] sm:$0xf]
    %v231 = vld [vmem:[#allocation8 + $0x144] sm:$0xf]
    %v232 = vld [vmem:[#allocation8 + $0x148] sm:$0xf]
    %v233 = vld [vmem:[#allocation8 + $0x14c] sm:$0xf]
    %v234 = vld [vmem:[#allocation8 + $0x150] sm:$0xf]
    %v235 = vld [vmem:[#allocation8 + $0x154] sm:$0xf]
    %v236 = vld [vmem:[#allocation8 + $0x158] sm:$0xf]
    %v237 = vld [vmem:[#allocation8 + $0x15c] sm:$0xf]
    %v238 = vld [vmem:[#allocation8 + $0x160] sm:$0xf]
    %v239 = vld [vmem:[#allocation8 + $0x164] sm:$0xf]
    %v240 = vld [vmem:[#allocation8 + $0x168] sm:$0xf]
    %v241 = vld [vmem:[#allocation8 + $0x16c] sm:$0xf]
    %v242 = vld [vmem:[#allocation8 + $0x170] sm:$0xf]
    %v243 = vld [vmem:[#allocation8 + $0x174] sm:$0xf]
    %v244 = vld [vmem:[#allocation8 + $0x178] sm:$0xf]
    %v245 = vld [vmem:[#allocation8 + $0x17c] sm:$0xf]
    %v246 = vld [vmem:[#allocation8 + $0x180] sm:$0xf]
    %v247 = vld [vmem:[#allocation8 + $0x184] sm:$0xf]
    %v248 = vld [vmem:[#allocation8 + $0x188] sm:$0xf]
    %v249 = vld [vmem:[#allocation8 + $0x18c] sm:$0xf]
    %v250 = vld [vmem:[#allocation8 + $0x190] sm:$0xf]
    %v251 = vld [vmem:[#allocation8 + $0x194] sm:$0xf]
    %v252 = vld [vmem:[#allocation8 + $0x198] sm:$0xf]
    %v253 = vld [vmem:[#allocation8 + $0x19c] sm:$0xf]
    %v254 = vld [vmem:[#allocation8 + $0x1a0] sm:$0xf]
    %v255 = vld [vmem:[#allocation8 + $0x1a4] sm:$0xf]
    %v256 = vld [vmem:[#allocation8 + $0x1a8] sm:$0xf]
    %v257 = vld [vmem:[#allocation8 + $0x1ac] sm:$0xf]
    %v258 = vld [vmem:[#allocation8 + $0x1b0] sm:$0xf]
    %v259 = vld [vmem:[#allocation8 + $0x1b4] sm:$0xf]
    %v260 = vld [vmem:[#allocation8 + $0x1b8] sm:$0xf]
    %v261 = vld [vmem:[#allocation8 + $0x1bc] sm:$0xf]
    %v262 = vld [vmem:[#allocation8 + $0x1c0] sm:$0x3]
    %v263 = vld [vmem:[#allocation5] sm:$0xff]
    %v264 = vld [vmem:[#allocation5 + $0x8] sm:$0xff]
    %v265 = vld [vmem:[#allocation5 + $0x10] sm:$0xff]
    %v266 = vld [vmem:[#allocation5 + $0x18] sm:$0xff]
    %v267 = vld [vmem:[#allocation5 + $0x20] sm:$0xff]
    %v268 = vld [vmem:[#allocation5 + $0x28] sm:$0xff]
    %v269 = vld [vmem:[#allocation5 + $0x30] sm:$0xff]
    %v270 = vld [vmem:[#allocation5 + $0x38] sm:$0xff]
    %v271 = vpack.c.bf16 %v263, %v263
    %v272 = vpack.c.bf16 %v264, %v264
    %v273 = vpack.c.bf16 %v265, %v265
    %v274 = vpack.c.bf16 %v266, %v266
    %v275 = vpack.c.bf16 %v267, %v267
    %v276 = vpack.c.bf16 %v268, %v268
    %v277 = vpack.c.bf16 %v269, %v269
    %v278 = vpack.c.bf16 %v270, %v270
    %v279 = vld [vmem:[#allocation10] sm:$0xf]
    %v280 = vld [vmem:[#allocation10 + $0x4] sm:$0xf]
    %v281 = vld [vmem:[#allocation10 + $0x8] sm:$0xf]
    %v282 = vld [vmem:[#allocation10 + $0xc] sm:$0xf]
    %v283 = vld [vmem:[#allocation10 + $0x10] sm:$0xf]
    %v284 = vld [vmem:[#allocation10 + $0x14] sm:$0xf]
    %v285 = vld [vmem:[#allocation10 + $0x18] sm:$0xf]
    %v286 = vld [vmem:[#allocation10 + $0x1c] sm:$0xf]
    %v287 = vld [vmem:[#allocation10 + $0x20] sm:$0xf]
    %v288 = vld [vmem:[#allocation10 + $0x24] sm:$0xf]
    %v289 = vld [vmem:[#allocation10 + $0x28] sm:$0xf]
    %v290 = vld [vmem:[#allocation10 + $0x2c] sm:$0xf]
    %v291 = vld [vmem:[#allocation10 + $0x30] sm:$0xf]
    %v292 = vld [vmem:[#allocation10 + $0x34] sm:$0xf]
    %v293 = vld [vmem:[#allocation10 + $0x38] sm:$0xf]
    %v294 = vld [vmem:[#allocation10 + $0x3c] sm:$0xf]
    %v295 = vld [vmem:[#allocation10 + $0x40] sm:$0xf]
    %v296 = vld [vmem:[#allocation10 + $0x44] sm:$0xf]
    %v297 = vld [vmem:[#allocation10 + $0x48] sm:$0xf]
    %v298 = vld [vmem:[#allocation10 + $0x4c] sm:$0xf]
    %v299 = vld [vmem:[#allocation10 + $0x50] sm:$0xf]
    %v300 = vld [vmem:[#allocation10 + $0x54] sm:$0xf]
    %v301 = vld [vmem:[#allocation10 + $0x58] sm:$0xf]
    %v302 = vld [vmem:[#allocation10 + $0x5c] sm:$0xf]
    %v303 = vld [vmem:[#allocation10 + $0x60] sm:$0xf]
    %v304 = vld [vmem:[#allocation10 + $0x64] sm:$0xf]
    %v305 = vld [vmem:[#allocation10 + $0x68] sm:$0xf]
    %v306 = vld [vmem:[#allocation10 + $0x6c] sm:$0xf]
    %v307 = vld [vmem:[#allocation10 + $0x70] sm:$0xf]
    %v308 = vld [vmem:[#allocation10 + $0x74] sm:$0xf]
    %v309 = vld [vmem:[#allocation10 + $0x78] sm:$0xf]
    %v310 = vld [vmem:[#allocation10 + $0x7c] sm:$0xf]
    %v311 = vld [vmem:[#allocation10 + $0x80] sm:$0xf]
    %v312 = vld [vmem:[#allocation10 + $0x84] sm:$0xf]
    %v313 = vld [vmem:[#allocation10 + $0x88] sm:$0xf]
    %v314 = vld [vmem:[#allocation10 + $0x8c] sm:$0xf]
    %v315 = vld [vmem:[#allocation10 + $0x90] sm:$0xf]
    %v316 = vld [vmem:[#allocation10 + $0x94] sm:$0xf]
    %v317 = vld [vmem:[#allocation10 + $0x98] sm:$0xf]
    %v318 = vld [vmem:[#allocation10 + $0x9c] sm:$0xf]
    %v319 = vld [vmem:[#allocation10 + $0xa0] sm:$0xf]
    %v320 = vld [vmem:[#allocation10 + $0xa4] sm:$0xf]
    %v321 = vld [vmem:[#allocation10 + $0xa8] sm:$0xf]
    %v322 = vld [vmem:[#allocation10 + $0xac] sm:$0xf]
    %v323 = vld [vmem:[#allocation10 + $0xb0] sm:$0xf]
    %v324 = vld [vmem:[#allocation10 + $0xb4] sm:$0xf]
    %v325 = vld [vmem:[#allocation10 + $0xb8] sm:$0xf]
    %v326 = vld [vmem:[#allocation10 + $0xbc] sm:$0xf]
    %v327 = vld [vmem:[#allocation10 + $0xc0] sm:$0xf]
    %v328 = vld [vmem:[#allocation10 + $0xc4] sm:$0xf]
    %v329 = vld [vmem:[#allocation10 + $0xc8] sm:$0xf]
    %v330 = vld [vmem:[#allocation10 + $0xcc] sm:$0xf]
    %v331 = vld [vmem:[#allocation10 + $0xd0] sm:$0xf]
    %v332 = vld [vmem:[#allocation10 + $0xd4] sm:$0xf]
    %v333 = vld [vmem:[#allocation10 + $0xd8] sm:$0xf]
    %v334 = vld [vmem:[#allocation10 + $0xdc] sm:$0xf]
    %v335 = vld [vmem:[#allocation10 + $0xe0] sm:$0xf]
    %v336 = vld [vmem:[#allocation10 + $0xe4] sm:$0xf]
    %v337 = vld [vmem:[#allocation10 + $0xe8] sm:$0xf]
    %v338 = vld [vmem:[#allocation10 + $0xec] sm:$0xf]
    %v339 = vld [vmem:[#allocation10 + $0xf0] sm:$0xf]
    %v340 = vld [vmem:[#allocation10 + $0xf4] sm:$0xf]
    %v341 = vld [vmem:[#allocation10 + $0xf8] sm:$0xf]
    %v342 = vld [vmem:[#allocation10 + $0xfc] sm:$0xf]
    %v343 = vld [vmem:[#allocation10 + $0x100] sm:$0xf]
    %v344 = vld [vmem:[#allocation10 + $0x104] sm:$0xf]
    %v345 = vld [vmem:[#allocation10 + $0x108] sm:$0xf]
    %v346 = vld [vmem:[#allocation10 + $0x10c] sm:$0xf]
    %v347 = vld [vmem:[#allocation10 + $0x110] sm:$0xf]
    %v348 = vld [vmem:[#allocation10 + $0x114] sm:$0xf]
    %v349 = vld [vmem:[#allocation10 + $0x118] sm:$0xf]
    %v350 = vld [vmem:[#allocation10 + $0x11c] sm:$0xf]
    %v351 = vld [vmem:[#allocation10 + $0x120] sm:$0xf]
    %v352 = vld [vmem:[#allocation10 + $0x124] sm:$0xf]
    %v353 = vld [vmem:[#allocation10 + $0x128] sm:$0xf]
    %v354 = vld [vmem:[#allocation10 + $0x12c] sm:$0xf]
    %v355 = vld [vmem:[#allocation10 + $0x130] sm:$0xf]
    %v356 = vld [vmem:[#allocation10 + $0x134] sm:$0xf]
    %v357 = vld [vmem:[#allocation10 + $0x138] sm:$0xf]
    %v358 = vld [vmem:[#allocation10 + $0x13c] sm:$0xf]
    %v359 = vld [vmem:[#allocation10 + $0x140] sm:$0xf]
    %v360 = vld [vmem:[#allocation10 + $0x144] sm:$0xf]
    %v361 = vld [vmem:[#allocation10 + $0x148] sm:$0xf]
    %v362 = vld [vmem:[#allocation10 + $0x14c] sm:$0xf]
    %v363 = vld [vmem:[#allocation10 + $0x150] sm:$0xf]
    %v364 = vld [vmem:[#allocation10 + $0x154] sm:$0xf]
    %v365 = vld [vmem:[#allocation10 + $0x158] sm:$0xf]
    %v366 = vld [vmem:[#allocation10 + $0x15c] sm:$0xf]
    %v367 = vld [vmem:[#allocation10 + $0x160] sm:$0xf]
    %v368 = vld [vmem:[#allocation10 + $0x164] sm:$0xf]
    %v369 = vld [vmem:[#allocation10 + $0x168] sm:$0xf]
    %v370 = vld [vmem:[#allocation10 + $0x16c] sm:$0xf]
    %v371 = vld [vmem:[#allocation10 + $0x170] sm:$0xf]
    %v372 = vld [vmem:[#allocation10 + $0x174] sm:$0xf]
    %v373 = vld [vmem:[#allocation10 + $0x178] sm:$0xf]
    %v374 = vld [vmem:[#allocation10 + $0x17c] sm:$0xf]
    %v375 = vld [vmem:[#allocation10 + $0x180] sm:$0xf]
    %v376 = vld [vmem:[#allocation10 + $0x184] sm:$0xf]
    %v377 = vld [vmem:[#allocation10 + $0x188] sm:$0xf]
    %v378 = vld [vmem:[#allocation10 + $0x18c] sm:$0xf]
    %v379 = vld [vmem:[#allocation10 + $0x190] sm:$0xf]
    %v380 = vld [vmem:[#allocation10 + $0x194] sm:$0xf]
    %v381 = vld [vmem:[#allocation10 + $0x198] sm:$0xf]
    %v382 = vld [vmem:[#allocation10 + $0x19c] sm:$0xf]
    %v383 = vld [vmem:[#allocation10 + $0x1a0] sm:$0xf]
    %v384 = vld [vmem:[#allocation10 + $0x1a4] sm:$0xf]
    %v385 = vld [vmem:[#allocation10 + $0x1a8] sm:$0xf]
    %v386 = vld [vmem:[#allocation10 + $0x1ac] sm:$0xf]
    %v387 = vld [vmem:[#allocation10 + $0x1b0] sm:$0xf]
    %v388 = vld [vmem:[#allocation10 + $0x1b4] sm:$0xf]
    %v389 = vld [vmem:[#allocation10 + $0x1b8] sm:$0xf]
    %v390 = vld [vmem:[#allocation10 + $0x1bc] sm:$0xf]
    %v391 = vld [vmem:[#allocation10 + $0x1c0] sm:$0x3]
    %v505 = vunpack.c.l.b16 %v279
    %v506 = vunpack.c.l.b16 %v280
    %v507 = vunpack.c.l.b16 %v281
    %v508 = vunpack.c.l.b16 %v282
    %v509 = vunpack.c.l.b16 %v283
    %v510 = vunpack.c.l.b16 %v284
    %v511 = vunpack.c.l.b16 %v285
    %v512 = vunpack.c.l.b16 %v286
    %v513 = vunpack.c.l.b16 %v287
    %v514 = vunpack.c.l.b16 %v288
    %v515 = vunpack.c.l.b16 %v289
    %v516 = vunpack.c.l.b16 %v290
    %v517 = vunpack.c.l.b16 %v291
    %v518 = vunpack.c.l.b16 %v292
    %v519 = vunpack.c.l.b16 %v293
    %v520 = vunpack.c.l.b16 %v294
    %v521 = vunpack.c.l.b16 %v295
    %v522 = vunpack.c.l.b16 %v296
    %v523 = vunpack.c.l.b16 %v297
    %v524 = vunpack.c.l.b16 %v298
    %v525 = vunpack.c.l.b16 %v299
    %v526 = vunpack.c.l.b16 %v300
    %v527 = vunpack.c.l.b16 %v301
    %v528 = vunpack.c.l.b16 %v302
    %v529 = vunpack.c.l.b16 %v303
    %v530 = vunpack.c.l.b16 %v304
    %v531 = vunpack.c.l.b16 %v305
    %v532 = vunpack.c.l.b16 %v306
    %v533 = vunpack.c.l.b16 %v307
    %v534 = vunpack.c.l.b16 %v308
    %v535 = vunpack.c.l.b16 %v309
    %v536 = vunpack.c.l.b16 %v310
    %v537 = vunpack.c.l.b16 %v311
    %v538 = vunpack.c.l.b16 %v312
    %v539 = vunpack.c.l.b16 %v313
    %v540 = vunpack.c.l.b16 %v314
    %v541 = vunpack.c.l.b16 %v315
    %v542 = vunpack.c.l.b16 %v316
    %v543 = vunpack.c.l.b16 %v317
    %v544 = vunpack.c.l.b16 %v318
    %v545 = vunpack.c.l.b16 %v319
    %v546 = vunpack.c.l.b16 %v320
    %v547 = vunpack.c.l.b16 %v321
    %v548 = vunpack.c.l.b16 %v322
    %v549 = vunpack.c.l.b16 %v323
    %v550 = vunpack.c.l.b16 %v324
    %v551 = vunpack.c.l.b16 %v325
    %v552 = vunpack.c.l.b16 %v326
    %v553 = vunpack.c.l.b16 %v327
    %v554 = vunpack.c.l.b16 %v328
    %v555 = vunpack.c.l.b16 %v329
    %v556 = vunpack.c.l.b16 %v330
    %v557 = vunpack.c.l.b16 %v331
    %v558 = vunpack.c.l.b16 %v332
    %v559 = vunpack.c.l.b16 %v333
    %v560 = vunpack.c.l.b16 %v334
    %v561 = vunpack.c.l.b16 %v335
    %v562 = vunpack.c.l.b16 %v336
    %v563 = vunpack.c.l.b16 %v337
    %v564 = vunpack.c.l.b16 %v338
    %v565 = vunpack.c.l.b16 %v339
    %v566 = vunpack.c.l.b16 %v340
    %v567 = vunpack.c.l.b16 %v341
    %v568 = vunpack.c.l.b16 %v342
    %v569 = vunpack.c.l.b16 %v343
    %v570 = vunpack.c.l.b16 %v344
    %v571 = vunpack.c.l.b16 %v345
    %v572 = vunpack.c.l.b16 %v346
    %v573 = vunpack.c.l.b16 %v347
    %v574 = vunpack.c.l.b16 %v348
    %v575 = vunpack.c.l.b16 %v349
    %v576 = vunpack.c.l.b16 %v350
    %v577 = vunpack.c.l.b16 %v351
    %v578 = vunpack.c.l.b16 %v352
    %v579 = vunpack.c.l.b16 %v353
    %v580 = vunpack.c.l.b16 %v354
    %v581 = vunpack.c.l.b16 %v355
    %v582 = vunpack.c.l.b16 %v356
    %v583 = vunpack.c.l.b16 %v357
    %v584 = vunpack.c.l.b16 %v358
    %v585 = vunpack.c.l.b16 %v359
    %v586 = vunpack.c.l.b16 %v360
    %v587 = vunpack.c.l.b16 %v361
    %v588 = vunpack.c.l.b16 %v362
    %v589 = vunpack.c.l.b16 %v363
    %v590 = vunpack.c.l.b16 %v364
    %v591 = vunpack.c.l.b16 %v365
    %v592 = vunpack.c.l.b16 %v366
    %v593 = vunpack.c.l.b16 %v367
    %v594 = vunpack.c.l.b16 %v368
    %v595 = vunpack.c.l.b16 %v369
    %v596 = vunpack.c.l.b16 %v370
    %v597 = vunpack.c.l.b16 %v371
    %v598 = vunpack.c.l.b16 %v372
    %v599 = vunpack.c.l.b16 %v373
    %v600 = vunpack.c.l.b16 %v374
    %v601 = vunpack.c.l.b16 %v375
    %v602 = vunpack.c.l.b16 %v376
    %v603 = vunpack.c.l.b16 %v377
    %v604 = vunpack.c.l.b16 %v378
    %v605 = vunpack.c.l.b16 %v379
    %v606 = vunpack.c.l.b16 %v380
    %v607 = vunpack.c.l.b16 %v381
    %v608 = vunpack.c.l.b16 %v382
    %v609 = vunpack.c.l.b16 %v383
    %v610 = vunpack.c.l.b16 %v384
    %v611 = vunpack.c.l.b16 %v385
    %v612 = vunpack.c.l.b16 %v386
    %v613 = vunpack.c.l.b16 %v387
    %v614 = vunpack.c.l.b16 %v388
    %v615 = vunpack.c.l.b16 %v389
    %v616 = vunpack.c.l.b16 %v390
    %v617 = vunpack.c.l.b16 %v391
    %v618 = vpack.c.b16 %v506, %v505
    %v619 = vpack.c.b16 %v508, %v507
    %v620 = vpack.c.b16 %v510, %v509
    %v621 = vpack.c.b16 %v512, %v511
    %v622 = vpack.c.b16 %v514, %v513
    %v623 = vpack.c.b16 %v516, %v515
    %v624 = vpack.c.b16 %v518, %v517
    %v625 = vpack.c.b16 %v520, %v519
    %v626 = vpack.c.b16 %v522, %v521
    %v627 = vpack.c.b16 %v524, %v523
    %v628 = vpack.c.b16 %v526, %v525
    %v629 = vpack.c.b16 %v528, %v527
    %v630 = vpack.c.b16 %v530, %v529
    %v631 = vpack.c.b16 %v532, %v531
    %v632 = vpack.c.b16 %v534, %v533
    %v633 = vpack.c.b16 %v536, %v535
    %v634 = vpack.c.b16 %v538, %v537
    %v635 = vpack.c.b16 %v540, %v539
    %v636 = vpack.c.b16 %v542, %v541
    %v637 = vpack.c.b16 %v544, %v543
    %v638 = vpack.c.b16 %v546, %v545
    %v639 = vpack.c.b16 %v548, %v547
    %v640 = vpack.c.b16 %v550, %v549
    %v641 = vpack.c.b16 %v552, %v551
    %v642 = vpack.c.b16 %v554, %v553
    %v643 = vpack.c.b16 %v556, %v555
    %v644 = vpack.c.b16 %v558, %v557
    %v645 = vpack.c.b16 %v560, %v559
    %v646 = vpack.c.b16 %v562, %v561
    %v647 = vpack.c.b16 %v564, %v563
    %v648 = vpack.c.b16 %v566, %v565
    %v649 = vpack.c.b16 %v568, %v567
    %v650 = vpack.c.b16 %v570, %v569
    %v651 = vpack.c.b16 %v572, %v571
    %v652 = vpack.c.b16 %v574, %v573
    %v653 = vpack.c.b16 %v576, %v575
    %v654 = vpack.c.b16 %v578, %v577
    %v655 = vpack.c.b16 %v580, %v579
    %v656 = vpack.c.b16 %v582, %v581
    %v657 = vpack.c.b16 %v584, %v583
    %v658 = vpack.c.b16 %v586, %v585
    %v659 = vpack.c.b16 %v588, %v587
    %v660 = vpack.c.b16 %v590, %v589
    %v661 = vpack.c.b16 %v592, %v591
    %v662 = vpack.c.b16 %v594, %v593
    %v663 = vpack.c.b16 %v596, %v595
    %v664 = vpack.c.b16 %v598, %v597
    %v665 = vpack.c.b16 %v600, %v599
    %v666 = vpack.c.b16 %v602, %v601
    %v667 = vpack.c.b16 %v604, %v603
    %v668 = vpack.c.b16 %v606, %v605
    %v669 = vpack.c.b16 %v608, %v607
    %v670 = vpack.c.b16 %v610, %v609
    %v671 = vpack.c.b16 %v612, %v611
    %v672 = vpack.c.b16 %v614, %v613
    %v673 = vpack.c.b16 %v616, %v615
    %v674 = vpack.c.b16 %v617, %v617
    %vm731 = vcmask 31744
    %v733 = vsel %vm731, %v278, 0
    %vm735 = vcmask 1041408
    %v737 = vsel %vm735, %v674, 0
    %739 = vmatpush.bf16.msra.mxu0 %v625
    %740 = vmatpush.bf16.msra.mxu0 %v624
    %741 = vmatpush.bf16.msra.mxu0 %v623
    %742 = vmatpush.bf16.msra.mxu0 %v622
    %743 = vmatpush.bf16.msra.mxu0 %v621
    %744 = vmatpush.bf16.msra.mxu0 %v620
    %745 = vmatpush.bf16.msra.mxu0 %v619
    %746 = vmatpush.bf16.msra.mxu0 %v618
    %747 = vmatmul.bf16.gmra.mxu0 %v271
    %v748 = vpop.f32.mrf.mxu0
    %v749 = vadd.f32 0.0, %v748
    %v750 = vpop.f32.mrf.mxu0
    %751 = vdwg.mxu0
    %752 = vmatpush.bf16.msra.mxu0 %v633
    %753 = vmatpush.bf16.msra.mxu0 %v632
    %754 = vmatpush.bf16.msra.mxu0 %v631
    %755 = vmatpush.bf16.msra.mxu0 %v630
    %756 = vmatpush.bf16.msra.mxu0 %v629
    %757 = vmatpush.bf16.msra.mxu0 %v628
    %758 = vmatpush.bf16.msra.mxu0 %v627
    %759 = vmatpush.bf16.msra.mxu0 %v626
    %760 = vmatmul.bf16.gmra.mxu0 %v272
    %v761 = vpop.f32.mrf.mxu0
    %v762 = vadd.f32 %v749, %v761
    %v763 = vpop.f32.mrf.mxu0
    %764 = vdwg.mxu0
    %765 = vmatpush.bf16.msra.mxu0 %v641
    %766 = vmatpush.bf16.msra.mxu0 %v640
    %767 = vmatpush.bf16.msra.mxu0 %v639
    %768 = vmatpush.bf16.msra.mxu0 %v638
    %769 = vmatpush.bf16.msra.mxu0 %v637
    %770 = vmatpush.bf16.msra.mxu0 %v636
    %771 = vmatpush.bf16.msra.mxu0 %v635
    %772 = vmatpush.bf16.msra.mxu0 %v634
    %773 = vmatmul.bf16.gmra.mxu0 %v273
    %v774 = vpop.f32.mrf.mxu0
    %v775 = vadd.f32 %v762, %v774
    %v776 = vpop.f32.mrf.mxu0
    %777 = vdwg.mxu0
    %778 = vmatpush.bf16.msra.mxu0 %v649
    %779 = vmatpush.bf16.msra.mxu0 %v648
    %780 = vmatpush.bf16.msra.mxu0 %v647
    %781 = vmatpush.bf16.msra.mxu0 %v646
    %782 = vmatpush.bf16.msra.mxu0 %v645
    %783 = vmatpush.bf16.msra.mxu0 %v644
    %784 = vmatpush.bf16.msra.mxu0 %v643
    %785 = vmatpush.bf16.msra.mxu0 %v642
    %786 = vmatmul.bf16.gmra.mxu0 %v274
    %v787 = vpop.f32.mrf.mxu0
    %v788 = vadd.f32 %v775, %v787
    %v789 = vpop.f32.mrf.mxu0
    %790 = vdwg.mxu0
    %791 = vmatpush.bf16.msra.mxu0 %v657
    %792 = vmatpush.bf16.msra.mxu0 %v656
    %793 = vmatpush.bf16.msra.mxu0 %v655
    %794 = vmatpush.bf16.msra.mxu0 %v654
    %795 = vmatpush.bf16.msra.mxu0 %v653
    %796 = vmatpush.bf16.msra.mxu0 %v652
    %797 = vmatpush.bf16.msra.mxu0 %v651
    %798 = vmatpush.bf16.msra.mxu0 %v650
    %799 = vmatmul.bf16.gmra.mxu0 %v275
    %v800 = vpop.f32.mrf.mxu0
    %v801 = vadd.f32 %v788, %v800
    %v802 = vpop.f32.mrf.mxu0
    %803 = vdwg.mxu0
    %804 = vmatpush.bf16.msra.mxu0 %v665
    %805 = vmatpush.bf16.msra.mxu0 %v664
    %806 = vmatpush.bf16.msra.mxu0 %v663
    %807 = vmatpush.bf16.msra.mxu0 %v662
    %808 = vmatpush.bf16.msra.mxu0 %v661
    %809 = vmatpush.bf16.msra.mxu0 %v660
    %810 = vmatpush.bf16.msra.mxu0 %v659
    %811 = vmatpush.bf16.msra.mxu0 %v658
    %812 = vmatmul.bf16.gmra.mxu0 %v276
    %v813 = vpop.f32.mrf.mxu0
    %v814 = vadd.f32 %v801, %v813
    %v815 = vpop.f32.mrf.mxu0
    %816 = vdwg.mxu0
    %817 = vmatpush.bf16.msra.mxu0 %v673
    %818 = vmatpush.bf16.msra.mxu0 %v672
    %819 = vmatpush.bf16.msra.mxu0 %v671
    %820 = vmatpush.bf16.msra.mxu0 %v670
    %821 = vmatpush.bf16.msra.mxu0 %v669
    %822 = vmatpush.bf16.msra.mxu0 %v668
    %823 = vmatpush.bf16.msra.mxu0 %v667
    %824 = vmatpush.bf16.msra.mxu0 %v666
    %825 = vmatmul.bf16.gmra.mxu0 %v277
    %v826 = vpop.f32.mrf.mxu0
    %v827 = vadd.f32 %v814, %v826
    %v828 = vpop.f32.mrf.mxu0
    %829 = vdwg.mxu0
    %830 = vmatpush.bf16.msra.mxu0 0
    %831 = vmatpush.bf16.msra.mxu0 0
    %832 = vmatpush.bf16.msra.mxu0 0
    %833 = vmatpush.bf16.msra.mxu0 0
    %834 = vmatpush.bf16.msra.mxu0 0
    %835 = vmatpush.bf16.msra.mxu0 0
    %836 = vmatpush.bf16.msra.mxu0 0
    %837 = vmatpush.bf16.msra.mxu0 %v737
    %838 = vmatmul.bf16.gmra.mxu0 %v733
    %v839 = vpop.f32.mrf.mxu0
    %v840 = vadd.f32 %v827, %v839
    %v841 = vpop.f32.mrf.mxu0
    %842 = vdwg.mxu0
    %v956 = vunpack.c.l.b16 %v150
    %v957 = vunpack.c.l.b16 %v151
    %v958 = vunpack.c.l.b16 %v152
    %v959 = vunpack.c.l.b16 %v153
    %v960 = vunpack.c.l.b16 %v154
    %v961 = vunpack.c.l.b16 %v155
    %v962 = vunpack.c.l.b16 %v156
    %v963 = vunpack.c.l.b16 %v157
    %v964 = vunpack.c.l.b16 %v158
    %v965 = vunpack.c.l.b16 %v159
    %v966 = vunpack.c.l.b16 %v160
    %v967 = vunpack.c.l.b16 %v161
    %v968 = vunpack.c.l.b16 %v162
    %v969 = vunpack.c.l.b16 %v163
    %v970 = vunpack.c.l.b16 %v164
    %v971 = vunpack.c.l.b16 %v165
    %v972 = vunpack.c.l.b16 %v166
    %v973 = vunpack.c.l.b16 %v167
    %v974 = vunpack.c.l.b16 %v168
    %v975 = vunpack.c.l.b16 %v169
    %v976 = vunpack.c.l.b16 %v170
    %v977 = vunpack.c.l.b16 %v171
    %v978 = vunpack.c.l.b16 %v172
    %v979 = vunpack.c.l.b16 %v173
    %v980 = vunpack.c.l.b16 %v174
    %v981 = vunpack.c.l.b16 %v175
    %v982 = vunpack.c.l.b16 %v176
    %v983 = vunpack.c.l.b16 %v177
    %v984 = vunpack.c.l.b16 %v178
    %v985 = vunpack.c.l.b16 %v179
    %v986 = vunpack.c.l.b16 %v180
    %v987 = vunpack.c.l.b16 %v181
    %v988 = vunpack.c.l.b16 %v182
    %v989 = vunpack.c.l.b16 %v183
    %v990 = vunpack.c.l.b16 %v184
    %v991 = vunpack.c.l.b16 %v185
    %v992 = vunpack.c.l.b16 %v186
    %v993 = vunpack.c.l.b16 %v187
    %v994 = vunpack.c.l.b16 %v188
    %v995 = vunpack.c.l.b16 %v189
    %v996 = vunpack.c.l.b16 %v190
    %v997 = vunpack.c.l.b16 %v191
    %v998 = vunpack.c.l.b16 %v192
    %v999 = vunpack.c.l.b16 %v193
    %v1000 = vunpack.c.l.b16 %v194
    %v1001 = vunpack.c.l.b16 %v195
    %v1002 = vunpack.c.l.b16 %v196
    %v1003 = vunpack.c.l.b16 %v197
    %v1004 = vunpack.c.l.b16 %v198
    %v1005 = vunpack.c.l.b16 %v199
    %v1006 = vunpack.c.l.b16 %v200
    %v1007 = vunpack.c.l.b16 %v201
    %v1008 = vunpack.c.l.b16 %v202
    %v1009 = vunpack.c.l.b16 %v203
    %v1010 = vunpack.c.l.b16 %v204
    %v1011 = vunpack.c.l.b16 %v205
    %v1012 = vunpack.c.l.b16 %v206
    %v1013 = vunpack.c.l.b16 %v207
    %v1014 = vunpack.c.l.b16 %v208
    %v1015 = vunpack.c.l.b16 %v209
    %v1016 = vunpack.c.l.b16 %v210
    %v1017 = vunpack.c.l.b16 %v211
    %v1018 = vunpack.c.l.b16 %v212
    %v1019 = vunpack.c.l.b16 %v213
    %v1020 = vunpack.c.l.b16 %v214
    %v1021 = vunpack.c.l.b16 %v215
    %v1022 = vunpack.c.l.b16 %v216
    %v1023 = vunpack.c.l.b16 %v217
    %v1024 = vunpack.c.l.b16 %v218
    %v1025 = vunpack.c.l.b16 %v219
    %v1026 = vunpack.c.l.b16 %v220
    %v1027 = vunpack.c.l.b16 %v221
    %v1028 = vunpack.c.l.b16 %v222
    %v1029 = vunpack.c.l.b16 %v223
    %v1030 = vunpack.c.l.b16 %v224
    %v1031 = vunpack.c.l.b16 %v225
    %v1032 = vunpack.c.l.b16 %v226
    %v1033 = vunpack.c.l.b16 %v227
    %v1034 = vunpack.c.l.b16 %v228
    %v1035 = vunpack.c.l.b16 %v229
    %v1036 = vunpack.c.l.b16 %v230
    %v1037 = vunpack.c.l.b16 %v231
    %v1038 = vunpack.c.l.b16 %v232
    %v1039 = vunpack.c.l.b16 %v233
    %v1040 = vunpack.c.l.b16 %v234
    %v1041 = vunpack.c.l.b16 %v235
    %v1042 = vunpack.c.l.b16 %v236
    %v1043 = vunpack.c.l.b16 %v237
    %v1044 = vunpack.c.l.b16 %v238
    %v1045 = vunpack.c.l.b16 %v239
    %v1046 = vunpack.c.l.b16 %v240
    %v1047 = vunpack.c.l.b16 %v241
    %v1048 = vunpack.c.l.b16 %v242
    %v1049 = vunpack.c.l.b16 %v243
    %v1050 = vunpack.c.l.b16 %v244
    %v1051 = vunpack.c.l.b16 %v245
    %v1052 = vunpack.c.l.b16 %v246
    %v1053 = vunpack.c.l.b16 %v247
    %v1054 = vunpack.c.l.b16 %v248
    %v1055 = vunpack.c.l.b16 %v249
    %v1056 = vunpack.c.l.b16 %v250
    %v1057 = vunpack.c.l.b16 %v251
    %v1058 = vunpack.c.l.b16 %v252
    %v1059 = vunpack.c.l.b16 %v253
    %v1060 = vunpack.c.l.b16 %v254
    %v1061 = vunpack.c.l.b16 %v255
    %v1062 = vunpack.c.l.b16 %v256
    %v1063 = vunpack.c.l.b16 %v257
    %v1064 = vunpack.c.l.b16 %v258
    %v1065 = vunpack.c.l.b16 %v259
    %v1066 = vunpack.c.l.b16 %v260
    %v1067 = vunpack.c.l.b16 %v261
    %v1068 = vunpack.c.l.b16 %v262
    %v1069 = vpack.c.b16 %v957, %v956
    %v1070 = vpack.c.b16 %v959, %v958
    %v1071 = vpack.c.b16 %v961, %v960
    %v1072 = vpack.c.b16 %v963, %v962
    %v1073 = vpack.c.b16 %v965, %v964
    %v1074 = vpack.c.b16 %v967, %v966
    %v1075 = vpack.c.b16 %v969, %v968
    %v1076 = vpack.c.b16 %v971, %v970
    %v1077 = vpack.c.b16 %v973, %v972
    %v1078 = vpack.c.b16 %v975, %v974
    %v1079 = vpack.c.b16 %v977, %v976
    %v1080 = vpack.c.b16 %v979, %v978
    %v1081 = vpack.c.b16 %v981, %v980
    %v1082 = vpack.c.b16 %v983, %v982
    %v1083 = vpack.c.b16 %v985, %v984
    %v1084 = vpack.c.b16 %v987, %v986
    %v1085 = vpack.c.b16 %v989, %v988
    %v1086 = vpack.c.b16 %v991, %v990
    %v1087 = vpack.c.b16 %v993, %v992
    %v1088 = vpack.c.b16 %v995, %v994
    %v1089 = vpack.c.b16 %v997, %v996
    %v1090 = vpack.c.b16 %v999, %v998
    %v1091 = vpack.c.b16 %v1001, %v1000
    %v1092 = vpack.c.b16 %v1003, %v1002
    %v1093 = vpack.c.b16 %v1005, %v1004
    %v1094 = vpack.c.b16 %v1007, %v1006
    %v1095 = vpack.c.b16 %v1009, %v1008
    %v1096 = vpack.c.b16 %v1011, %v1010
    %v1097 = vpack.c.b16 %v1013, %v1012
    %v1098 = vpack.c.b16 %v1015, %v1014
    %v1099 = vpack.c.b16 %v1017, %v1016
    %v1100 = vpack.c.b16 %v1019, %v1018
    %v1101 = vpack.c.b16 %v1021, %v1020
    %v1102 = vpack.c.b16 %v1023, %v1022
    %v1103 = vpack.c.b16 %v1025, %v1024
    %v1104 = vpack.c.b16 %v1027, %v1026
    %v1105 = vpack.c.b16 %v1029, %v1028
    %v1106 = vpack.c.b16 %v1031, %v1030
    %v1107 = vpack.c.b16 %v1033, %v1032
    %v1108 = vpack.c.b16 %v1035, %v1034
    %v1109 = vpack.c.b16 %v1037, %v1036
    %v1110 = vpack.c.b16 %v1039, %v1038
    %v1111 = vpack.c.b16 %v1041, %v1040
    %v1112 = vpack.c.b16 %v1043, %v1042
    %v1113 = vpack.c.b16 %v1045, %v1044
    %v1114 = vpack.c.b16 %v1047, %v1046
    %v1115 = vpack.c.b16 %v1049, %v1048
    %v1116 = vpack.c.b16 %v1051, %v1050
    %v1117 = vpack.c.b16 %v1053, %v1052
    %v1118 = vpack.c.b16 %v1055, %v1054
    %v1119 = vpack.c.b16 %v1057, %v1056
    %v1120 = vpack.c.b16 %v1059, %v1058
    %v1121 = vpack.c.b16 %v1061, %v1060
    %v1122 = vpack.c.b16 %v1063, %v1062
    %v1123 = vpack.c.b16 %v1065, %v1064
    %v1124 = vpack.c.b16 %v1067, %v1066
    %v1125 = vpack.c.b16 %v1068, %v1068
    %v1183 = vsel %vm731, %v149, 0
    %v1186 = vsel %vm735, %v1125, 0
    %1188 = vmatpush.bf16.msra.mxu0 %v1076
    %1189 = vmatpush.bf16.msra.mxu0 %v1075
    %1190 = vmatpush.bf16.msra.mxu0 %v1074
    %1191 = vmatpush.bf16.msra.mxu0 %v1073
    %1192 = vmatpush.bf16.msra.mxu0 %v1072
    %1193 = vmatpush.bf16.msra.mxu0 %v1071
    %1194 = vmatpush.bf16.msra.mxu0 %v1070
    %1195 = vmatpush.bf16.msra.mxu0 %v1069
    %1196 = vmatmul.bf16.gmra.mxu0 %v142
    %v1197 = vpop.f32.mrf.mxu0
    %v1198 = vadd.f32 %v840, %v1197
    %v1199 = vpop.f32.mrf.mxu0
    %1200 = vdwg.mxu0
    %1201 = vmatpush.bf16.msra.mxu0 %v1084
    %1202 = vmatpush.bf16.msra.mxu0 %v1083
    %1203 = vmatpush.bf16.msra.mxu0 %v1082
    %1204 = vmatpush.bf16.msra.mxu0 %v1081
    %1205 = vmatpush.bf16.msra.mxu0 %v1080
    %1206 = vmatpush.bf16.msra.mxu0 %v1079
    %1207 = vmatpush.bf16.msra.mxu0 %v1078
    %1208 = vmatpush.bf16.msra.mxu0 %v1077
    %1209 = vmatmul.bf16.gmra.mxu0 %v143
    %v1210 = vpop.f32.mrf.mxu0
    %v1211 = vadd.f32 %v1198, %v1210
    %v1212 = vpop.f32.mrf.mxu0
    %1213 = vdwg.mxu0
    %1214 = vmatpush.bf16.msra.mxu0 %v1092
    %1215 = vmatpush.bf16.msra.mxu0 %v1091
    %1216 = vmatpush.bf16.msra.mxu0 %v1090
    %1217 = vmatpush.bf16.msra.mxu0 %v1089
    %1218 = vmatpush.bf16.msra.mxu0 %v1088
    %1219 = vmatpush.bf16.msra.mxu0 %v1087
    %1220 = vmatpush.bf16.msra.mxu0 %v1086
    %1221 = vmatpush.bf16.msra.mxu0 %v1085
    %1222 = vmatmul.bf16.gmra.mxu0 %v144
    %v1223 = vpop.f32.mrf.mxu0
    %v1224 = vadd.f32 %v1211, %v1223
    %v1225 = vpop.f32.mrf.mxu0
    %1226 = vdwg.mxu0
    %1227 = vmatpush.bf16.msra.mxu0 %v1100
    %1228 = vmatpush.bf16.msra.mxu0 %v1099
    %1229 = vmatpush.bf16.msra.mxu0 %v1098
    %1230 = vmatpush.bf16.msra.mxu0 %v1097
    %1231 = vmatpush.bf16.msra.mxu0 %v1096
    %1232 = vmatpush.bf16.msra.mxu0 %v1095
    %1233 = vmatpush.bf16.msra.mxu0 %v1094
    %1234 = vmatpush.bf16.msra.mxu0 %v1093
    %1235 = vmatmul.bf16.gmra.mxu0 %v145
    %v1236 = vpop.f32.mrf.mxu0
    %v1237 = vadd.f32 %v1224, %v1236
    %v1238 = vpop.f32.mrf.mxu0
    %1239 = vdwg.mxu0
    %1240 = vmatpush.bf16.msra.mxu0 %v1108
    %1241 = vmatpush.bf16.msra.mxu0 %v1107
    %1242 = vmatpush.bf16.msra.mxu0 %v1106
    %1243 = vmatpush.bf16.msra.mxu0 %v1105
    %1244 = vmatpush.bf16.msra.mxu0 %v1104
    %1245 = vmatpush.bf16.msra.mxu0 %v1103
    %1246 = vmatpush.bf16.msra.mxu0 %v1102
    %1247 = vmatpush.bf16.msra.mxu0 %v1101
    %1248 = vmatmul.bf16.gmra.mxu0 %v146
    %v1249 = vpop.f32.mrf.mxu0
    %v1250 = vadd.f32 %v1237, %v1249
    %v1251 = vpop.f32.mrf.mxu0
    %1252 = vdwg.mxu0
    %1253 = vmatpush.bf16.msra.mxu0 %v1116
    %1254 = vmatpush.bf16.msra.mxu0 %v1115
    %1255 = vmatpush.bf16.msra.mxu0 %v1114
    %1256 = vmatpush.bf16.msra.mxu0 %v1113
    %1257 = vmatpush.bf16.msra.mxu0 %v1112
    %1258 = vmatpush.bf16.msra.mxu0 %v1111
    %1259 = vmatpush.bf16.msra.mxu0 %v1110
    %1260 = vmatpush.bf16.msra.mxu0 %v1109
    %1261 = vmatmul.bf16.gmra.mxu0 %v147
    %v1262 = vpop.f32.mrf.mxu0
    %v1263 = vadd.f32 %v1250, %v1262
    %v1264 = vpop.f32.mrf.mxu0
    %1265 = vdwg.mxu0
    %1266 = vmatpush.bf16.msra.mxu0 %v1124
    %1267 = vmatpush.bf16.msra.mxu0 %v1123
    %1268 = vmatpush.bf16.msra.mxu0 %v1122
    %1269 = vmatpush.bf16.msra.mxu0 %v1121
    %1270 = vmatpush.bf16.msra.mxu0 %v1120
    %1271 = vmatpush.bf16.msra.mxu0 %v1119
    %1272 = vmatpush.bf16.msra.mxu0 %v1118
    %1273 = vmatpush.bf16.msra.mxu0 %v1117
    %1274 = vmatmul.bf16.gmra.mxu0 %v148
    %v1275 = vpop.f32.mrf.mxu0
    %v1276 = vadd.f32 %v1263, %v1275
    %v1277 = vpop.f32.mrf.mxu0
    %1278 = vdwg.mxu0
    %1279 = vmatpush.bf16.msra.mxu0 0
    %1280 = vmatpush.bf16.msra.mxu0 0
    %1281 = vmatpush.bf16.msra.mxu0 0
    %1282 = vmatpush.bf16.msra.mxu0 0
    %1283 = vmatpush.bf16.msra.mxu0 0
    %1284 = vmatpush.bf16.msra.mxu0 0
    %1285 = vmatpush.bf16.msra.mxu0 0
    %1286 = vmatpush.bf16.msra.mxu0 %v1186
    %1287 = vmatmul.bf16.gmra.mxu0 %v1183
    %v1288 = vpop.f32.mrf.mxu0
    %v1289 = vadd.f32 %v1276, %v1288
    %v1290 = vpop.f32.mrf.mxu0
    %1291 = vdwg.mxu0
    %v1292 = vld [vmem:[#allocation7] sm:$0xff]
    %v1293 = vld [vmem:[#allocation7 + $0x8] sm:$0xff]
    %v1294 = vld [vmem:[#allocation7 + $0x10] sm:$0xff]
    %v1295 = vld [vmem:[#allocation7 + $0x18] sm:$0xff]
    %v1296 = vld [vmem:[#allocation7 + $0x20] sm:$0xff]
    %v1297 = vpack.c.bf16 %v1292, %v1292
    %v1298 = vpack.c.bf16 %v1293, %v1293
    %v1299 = vpack.c.bf16 %v1294, %v1294
    %v1300 = vpack.c.bf16 %v1295, %v1295
    %v1301 = vpack.c.bf16 %v1296, %v1296
    %v1302 = vld [vmem:[#allocation11] sm:$0xf]
    %v1303 = vld [vmem:[#allocation11 + $0x4] sm:$0xf]
    %v1304 = vld [vmem:[#allocation11 + $0x8] sm:$0xf]
    %v1305 = vld [vmem:[#allocation11 + $0xc] sm:$0xf]
    %v1306 = vld [vmem:[#allocation11 + $0x10] sm:$0xf]
    %v1307 = vld [vmem:[#allocation11 + $0x14] sm:$0xf]
    %v1308 = vld [vmem:[#allocation11 + $0x18] sm:$0xf]
    %v1309 = vld [vmem:[#allocation11 + $0x1c] sm:$0xf]
    %v1310 = vld [vmem:[#allocation11 + $0x20] sm:$0xf]
    %v1311 = vld [vmem:[#allocation11 + $0x24] sm:$0xf]
    %v1312 = vld [vmem:[#allocation11 + $0x28] sm:$0xf]
    %v1313 = vld [vmem:[#allocation11 + $0x2c] sm:$0xf]
    %v1314 = vld [vmem:[#allocation11 + $0x30] sm:$0xf]
    %v1315 = vld [vmem:[#allocation11 + $0x34] sm:$0xf]
    %v1316 = vld [vmem:[#allocation11 + $0x38] sm:$0xf]
    %v1317 = vld [vmem:[#allocation11 + $0x3c] sm:$0xf]
    %v1318 = vld [vmem:[#allocation11 + $0x40] sm:$0xf]
    %v1319 = vld [vmem:[#allocation11 + $0x44] sm:$0xf]
    %v1320 = vld [vmem:[#allocation11 + $0x48] sm:$0xf]
    %v1321 = vld [vmem:[#allocation11 + $0x4c] sm:$0xf]
    %v1322 = vld [vmem:[#allocation11 + $0x50] sm:$0xf]
    %v1323 = vld [vmem:[#allocation11 + $0x54] sm:$0xf]
    %v1324 = vld [vmem:[#allocation11 + $0x58] sm:$0xf]
    %v1325 = vld [vmem:[#allocation11 + $0x5c] sm:$0xf]
    %v1326 = vld [vmem:[#allocation11 + $0x60] sm:$0xf]
    %v1327 = vld [vmem:[#allocation11 + $0x64] sm:$0xf]
    %v1328 = vld [vmem:[#allocation11 + $0x68] sm:$0xf]
    %v1329 = vld [vmem:[#allocation11 + $0x6c] sm:$0xf]
    %v1330 = vld [vmem:[#allocation11 + $0x70] sm:$0xf]
    %v1331 = vld [vmem:[#allocation11 + $0x74] sm:$0xf]
    %v1332 = vld [vmem:[#allocation11 + $0x78] sm:$0xf]
    %v1333 = vld [vmem:[#allocation11 + $0x7c] sm:$0xf]
    %v1334 = vld [vmem:[#allocation11 + $0x80] sm:$0xf]
    %v1335 = vld [vmem:[#allocation11 + $0x84] sm:$0xf]
    %v1336 = vld [vmem:[#allocation11 + $0x88] sm:$0xf]
    %v1337 = vld [vmem:[#allocation11 + $0x8c] sm:$0xf]
    %v1338 = vld [vmem:[#allocation11 + $0x90] sm:$0xf]
    %v1339 = vld [vmem:[#allocation11 + $0x94] sm:$0xf]
    %v1340 = vld [vmem:[#allocation11 + $0x98] sm:$0xf]
    %v1341 = vld [vmem:[#allocation11 + $0x9c] sm:$0xf]
    %v1342 = vld [vmem:[#allocation11 + $0xa0] sm:$0xf]
    %v1343 = vld [vmem:[#allocation11 + $0xa4] sm:$0xf]
    %v1344 = vld [vmem:[#allocation11 + $0xa8] sm:$0xf]
    %v1345 = vld [vmem:[#allocation11 + $0xac] sm:$0xf]
    %v1346 = vld [vmem:[#allocation11 + $0xb0] sm:$0xf]
    %v1347 = vld [vmem:[#allocation11 + $0xb4] sm:$0xf]
    %v1348 = vld [vmem:[#allocation11 + $0xb8] sm:$0xf]
    %v1349 = vld [vmem:[#allocation11 + $0xbc] sm:$0xf]
    %v1350 = vld [vmem:[#allocation11 + $0xc0] sm:$0xf]
    %v1351 = vld [vmem:[#allocation11 + $0xc4] sm:$0xf]
    %v1352 = vld [vmem:[#allocation11 + $0xc8] sm:$0xf]
    %v1353 = vld [vmem:[#allocation11 + $0xcc] sm:$0xf]
    %v1354 = vld [vmem:[#allocation11 + $0xd0] sm:$0xf]
    %v1355 = vld [vmem:[#allocation11 + $0xd4] sm:$0xf]
    %v1356 = vld [vmem:[#allocation11 + $0xd8] sm:$0xf]
    %v1357 = vld [vmem:[#allocation11 + $0xdc] sm:$0xf]
    %v1358 = vld [vmem:[#allocation11 + $0xe0] sm:$0xf]
    %v1359 = vld [vmem:[#allocation11 + $0xe4] sm:$0xf]
    %v1360 = vld [vmem:[#allocation11 + $0xe8] sm:$0xf]
    %v1361 = vld [vmem:[#allocation11 + $0xec] sm:$0xf]
    %v1362 = vld [vmem:[#allocation11 + $0xf0] sm:$0xf]
    %v1363 = vld [vmem:[#allocation11 + $0xf4] sm:$0xf]
    %v1364 = vld [vmem:[#allocation11 + $0xf8] sm:$0xf]
    %v1365 = vld [vmem:[#allocation11 + $0xfc] sm:$0xf]
    %v1366 = vld [vmem:[#allocation11 + $0x100] sm:$0xf]
    %v1367 = vld [vmem:[#allocation11 + $0x104] sm:$0xf]
    %v1368 = vld [vmem:[#allocation11 + $0x108] sm:$0xf]
    %v1369 = vld [vmem:[#allocation11 + $0x10c] sm:$0xf]
    %v1370 = vld [vmem:[#allocation11 + $0x110] sm:$0xf]
    %v1371 = vld [vmem:[#allocation11 + $0x114] sm:$0xf]
    %v1372 = vld [vmem:[#allocation11 + $0x118] sm:$0xf]
    %v1373 = vld [vmem:[#allocation11 + $0x11c] sm:$0xf]
    %v1374 = vld [vmem:[#allocation11 + $0x120] sm:$0xf]
    %v1375 = vld [vmem:[#allocation11 + $0x124] sm:$0xf]
    %v1376 = vld [vmem:[#allocation11 + $0x128] sm:$0xf]
    %v1452 = vunpack.c.l.b16 %v1302
    %v1453 = vunpack.c.l.b16 %v1303
    %v1454 = vunpack.c.l.b16 %v1304
    %v1455 = vunpack.c.l.b16 %v1305
    %v1456 = vunpack.c.l.b16 %v1306
    %v1457 = vunpack.c.l.b16 %v1307
    %v1458 = vunpack.c.l.b16 %v1308
    %v1459 = vunpack.c.l.b16 %v1309
    %v1460 = vunpack.c.l.b16 %v1310
    %v1461 = vunpack.c.l.b16 %v1311
    %v1462 = vunpack.c.l.b16 %v1312
    %v1463 = vunpack.c.l.b16 %v1313
    %v1464 = vunpack.c.l.b16 %v1314
    %v1465 = vunpack.c.l.b16 %v1315
    %v1466 = vunpack.c.l.b16 %v1316
    %v1467 = vunpack.c.l.b16 %v1317
    %v1468 = vunpack.c.l.b16 %v1318
    %v1469 = vunpack.c.l.b16 %v1319
    %v1470 = vunpack.c.l.b16 %v1320
    %v1471 = vunpack.c.l.b16 %v1321
    %v1472 = vunpack.c.l.b16 %v1322
    %v1473 = vunpack.c.l.b16 %v1323
    %v1474 = vunpack.c.l.b16 %v1324
    %v1475 = vunpack.c.l.b16 %v1325
    %v1476 = vunpack.c.l.b16 %v1326
    %v1477 = vunpack.c.l.b16 %v1327
    %v1478 = vunpack.c.l.b16 %v1328
    %v1479 = vunpack.c.l.b16 %v1329
    %v1480 = vunpack.c.l.b16 %v1330
    %v1481 = vunpack.c.l.b16 %v1331
    %v1482 = vunpack.c.l.b16 %v1332
    %v1483 = vunpack.c.l.b16 %v1333
    %v1484 = vunpack.c.l.b16 %v1334
    %v1485 = vunpack.c.l.b16 %v1335
    %v1486 = vunpack.c.l.b16 %v1336
    %v1487 = vunpack.c.l.b16 %v1337
    %v1488 = vunpack.c.l.b16 %v1338
    %v1489 = vunpack.c.l.b16 %v1339
    %v1490 = vunpack.c.l.b16 %v1340
    %v1491 = vunpack.c.l.b16 %v1341
    %v1492 = vunpack.c.l.b16 %v1342
    %v1493 = vunpack.c.l.b16 %v1343
    %v1494 = vunpack.c.l.b16 %v1344
    %v1495 = vunpack.c.l.b16 %v1345
    %v1496 = vunpack.c.l.b16 %v1346
    %v1497 = vunpack.c.l.b16 %v1347
    %v1498 = vunpack.c.l.b16 %v1348
    %v1499 = vunpack.c.l.b16 %v1349
    %v1500 = vunpack.c.l.b16 %v1350
    %v1501 = vunpack.c.l.b16 %v1351
    %v1502 = vunpack.c.l.b16 %v1352
    %v1503 = vunpack.c.l.b16 %v1353
    %v1504 = vunpack.c.l.b16 %v1354
    %v1505 = vunpack.c.l.b16 %v1355
    %v1506 = vunpack.c.l.b16 %v1356
    %v1507 = vunpack.c.l.b16 %v1357
    %v1508 = vunpack.c.l.b16 %v1358
    %v1509 = vunpack.c.l.b16 %v1359
    %v1510 = vunpack.c.l.b16 %v1360
    %v1511 = vunpack.c.l.b16 %v1361
    %v1512 = vunpack.c.l.b16 %v1362
    %v1513 = vunpack.c.l.b16 %v1363
    %v1514 = vunpack.c.l.b16 %v1364
    %v1515 = vunpack.c.l.b16 %v1365
    %v1516 = vunpack.c.l.b16 %v1366
    %v1517 = vunpack.c.l.b16 %v1367
    %v1518 = vunpack.c.l.b16 %v1368
    %v1519 = vunpack.c.l.b16 %v1369
    %v1520 = vunpack.c.l.b16 %v1370
    %v1521 = vunpack.c.l.b16 %v1371
    %v1522 = vunpack.c.l.b16 %v1372
    %v1523 = vunpack.c.l.b16 %v1373
    %v1524 = vunpack.c.l.b16 %v1374
    %v1525 = vunpack.c.l.b16 %v1375
    %v1526 = vunpack.c.l.b16 %v1376
    %v1527 = vpack.c.b16 %v1453, %v1452
    %v1528 = vpack.c.b16 %v1455, %v1454
    %v1529 = vpack.c.b16 %v1457, %v1456
    %v1530 = vpack.c.b16 %v1459, %v1458
    %v1531 = vpack.c.b16 %v1461, %v1460
    %v1532 = vpack.c.b16 %v1463, %v1462
    %v1533 = vpack.c.b16 %v1465, %v1464
    %v1534 = vpack.c.b16 %v1467, %v1466
    %v1535 = vpack.c.b16 %v1469, %v1468
    %v1536 = vpack.c.b16 %v1471, %v1470
    %v1537 = vpack.c.b16 %v1473, %v1472
    %v1538 = vpack.c.b16 %v1475, %v1474
    %v1539 = vpack.c.b16 %v1477, %v1476
    %v1540 = vpack.c.b16 %v1479, %v1478
    %v1541 = vpack.c.b16 %v1481, %v1480
    %v1542 = vpack.c.b16 %v1483, %v1482
    %v1543 = vpack.c.b16 %v1485, %v1484
    %v1544 = vpack.c.b16 %v1487, %v1486
    %v1545 = vpack.c.b16 %v1489, %v1488
    %v1546 = vpack.c.b16 %v1491, %v1490
    %v1547 = vpack.c.b16 %v1493, %v1492
    %v1548 = vpack.c.b16 %v1495, %v1494
    %v1549 = vpack.c.b16 %v1497, %v1496
    %v1550 = vpack.c.b16 %v1499, %v1498
    %v1551 = vpack.c.b16 %v1501, %v1500
    %v1552 = vpack.c.b16 %v1503, %v1502
    %v1553 = vpack.c.b16 %v1505, %v1504
    %v1554 = vpack.c.b16 %v1507, %v1506
    %v1555 = vpack.c.b16 %v1509, %v1508
    %v1556 = vpack.c.b16 %v1511, %v1510
    %v1557 = vpack.c.b16 %v1513, %v1512
    %v1558 = vpack.c.b16 %v1515, %v1514
    %v1559 = vpack.c.b16 %v1517, %v1516
    %v1560 = vpack.c.b16 %v1519, %v1518
    %v1561 = vpack.c.b16 %v1521, %v1520
    %v1562 = vpack.c.b16 %v1523, %v1522
    %v1563 = vpack.c.b16 %v1525, %v1524
    %v1564 = vpack.c.b16 %v1526, %v1526
    %vm1602 = vcmask 719872
    %v1604 = vsel %vm1602, %v1301, 0
    %vm1606 = vcmask 1043456
    %v1608 = vsel %vm1606, %v1564, 0
    %1610 = vmatpush.bf16.msra.mxu0 %v1534
    %1611 = vmatpush.bf16.msra.mxu0 %v1533
    %1612 = vmatpush.bf16.msra.mxu0 %v1532
    %1613 = vmatpush.bf16.msra.mxu0 %v1531
    %1614 = vmatpush.bf16.msra.mxu0 %v1530
    %1615 = vmatpush.bf16.msra.mxu0 %v1529
    %1616 = vmatpush.bf16.msra.mxu0 %v1528
    %1617 = vmatpush.bf16.msra.mxu0 %v1527
    %1618 = vmatmul.bf16.gmra.mxu0 %v1297
    %v1619 = vpop.f32.mrf.mxu0
    %v1620 = vadd.f32 0.0, %v1619
    %v1621 = vpop.f32.mrf.mxu0
    %1622 = vdwg.mxu0
    %1623 = vmatpush.bf16.msra.mxu0 %v1542
    %1624 = vmatpush.bf16.msra.mxu0 %v1541
    %1625 = vmatpush.bf16.msra.mxu0 %v1540
    %1626 = vmatpush.bf16.msra.mxu0 %v1539
    %1627 = vmatpush.bf16.msra.mxu0 %v1538
    %1628 = vmatpush.bf16.msra.mxu0 %v1537
    %1629 = vmatpush.bf16.msra.mxu0 %v1536
    %1630 = vmatpush.bf16.msra.mxu0 %v1535
    %1631 = vmatmul.bf16.gmra.mxu0 %v1298
    %v1632 = vpop.f32.mrf.mxu0
    %v1633 = vadd.f32 %v1620, %v1632
    %v1634 = vpop.f32.mrf.mxu0
    %1635 = vdwg.mxu0
    %1636 = vmatpush.bf16.msra.mxu0 %v1550
    %1637 = vmatpush.bf16.msra.mxu0 %v1549
    %1638 = vmatpush.bf16.msra.mxu0 %v1548
    %1639 = vmatpush.bf16.msra.mxu0 %v1547
    %1640 = vmatpush.bf16.msra.mxu0 %v1546
    %1641 = vmatpush.bf16.msra.mxu0 %v1545
    %1642 = vmatpush.bf16.msra.mxu0 %v1544
    %1643 = vmatpush.bf16.msra.mxu0 %v1543
    %1644 = vmatmul.bf16.gmra.mxu0 %v1299
    %v1645 = vpop.f32.mrf.mxu0
    %v1646 = vadd.f32 %v1633, %v1645
    %v1647 = vpop.f32.mrf.mxu0
    %1648 = vdwg.mxu0
    %1649 = vmatpush.bf16.msra.mxu0 %v1558
    %1650 = vmatpush.bf16.msra.mxu0 %v1557
    %1651 = vmatpush.bf16.msra.mxu0 %v1556
    %1652 = vmatpush.bf16.msra.mxu0 %v1555
    %1653 = vmatpush.bf16.msra.mxu0 %v1554
    %1654 = vmatpush.bf16.msra.mxu0 %v1553
    %1655 = vmatpush.bf16.msra.mxu0 %v1552
    %1656 = vmatpush.bf16.msra.mxu0 %v1551
    %1657 = vmatmul.bf16.gmra.mxu0 %v1300
    %v1658 = vpop.f32.mrf.mxu0
    %v1659 = vadd.f32 %v1646, %v1658
    %v1660 = vpop.f32.mrf.mxu0
    %1661 = vdwg.mxu0
    %1662 = vmatpush.bf16.msra.mxu0 0
    %1663 = vmatpush.bf16.msra.mxu0 0
    %1664 = vmatpush.bf16.msra.mxu0 %v1608
    %1665 = vmatpush.bf16.msra.mxu0 %v1563
    %1666 = vmatpush.bf16.msra.mxu0 %v1562
    %1667 = vmatpush.bf16.msra.mxu0 %v1561
    %1668 = vmatpush.bf16.msra.mxu0 %v1560
    %1669 = vmatpush.bf16.msra.mxu0 %v1559
    %1670 = vmatmul.bf16.gmra.mxu0 %v1604
    %v1671 = vpop.f32.mrf.mxu0
    %v1672 = vadd.f32 %v1659, %v1671
    %v1673 = vpop.f32.mrf.mxu0
    %1674 = vdwg.mxu0
    %v1675 = vadd.f32 %v1289, %v1672
    %v1676 = vld [vmem:[%s6] sm:$0x1]
    %v1678 = vperm.slane %v1676, 0
    %v1680 = vadd.f32 %v1675, %v1678
    %v1681 = vtanh.pop %v1680
    %v1682 = vpack.c.bf16 %v1681, %v1681
    %v1683 = vld [vmem:[#allocation13] sm:$0xf]
    %v1684 = vld [vmem:[#allocation13 + $0x4] sm:$0xf]
    %v1685 = vld [vmem:[#allocation13 + $0x8] sm:$0xf]
    %v1686 = vld [vmem:[#allocation13 + $0xc] sm:$0xf]
    %v1687 = vld [vmem:[#allocation13 + $0x10] sm:$0xf]
    %v1688 = vld [vmem:[#allocation13 + $0x14] sm:$0xf]
    %v1689 = vld [vmem:[#allocation13 + $0x18] sm:$0xf]
    %v1690 = vld [vmem:[#allocation13 + $0x1c] sm:$0xf]
    %v1691 = vld [vmem:[#allocation13 + $0x20] sm:$0xf]
    %v1692 = vld [vmem:[#allocation13 + $0x24] sm:$0xf]
    %v1693 = vld [vmem:[#allocation13 + $0x28] sm:$0xf]
    %v1694 = vld [vmem:[#allocation13 + $0x2c] sm:$0xf]
    %v1695 = vld [vmem:[#allocation13 + $0x30] sm:$0xf]
    %v1696 = vld [vmem:[#allocation13 + $0x34] sm:$0xf]
    %v1697 = vld [vmem:[#allocation13 + $0x38] sm:$0xf]
    %v1698 = vld [vmem:[#allocation13 + $0x3c] sm:$0xf]
    %v1715 = vunpack.c.l.b16 %v1683
    %v1716 = vunpack.c.l.b16 %v1684
    %v1717 = vunpack.c.l.b16 %v1685
    %v1718 = vunpack.c.l.b16 %v1686
    %v1719 = vunpack.c.l.b16 %v1687
    %v1720 = vunpack.c.l.b16 %v1688
    %v1721 = vunpack.c.l.b16 %v1689
    %v1722 = vunpack.c.l.b16 %v1690
    %v1723 = vunpack.c.l.b16 %v1691
    %v1724 = vunpack.c.l.b16 %v1692
    %v1725 = vunpack.c.l.b16 %v1693
    %v1726 = vunpack.c.l.b16 %v1694
    %v1727 = vunpack.c.l.b16 %v1695
    %v1728 = vunpack.c.l.b16 %v1696
    %v1729 = vunpack.c.l.b16 %v1697
    %v1730 = vunpack.c.l.b16 %v1698
    %v1731 = vpack.c.b16 %v1716, %v1715
    %v1732 = vpack.c.b16 %v1718, %v1717
    %v1733 = vpack.c.b16 %v1720, %v1719
    %v1734 = vpack.c.b16 %v1722, %v1721
    %v1735 = vpack.c.b16 %v1724, %v1723
    %v1736 = vpack.c.b16 %v1726, %v1725
    %v1737 = vpack.c.b16 %v1728, %v1727
    %v1738 = vpack.c.b16 %v1730, %v1729
    %1747 = vmatpush.bf16.msra.mxu0 %v1738
    %1748 = vmatpush.bf16.msra.mxu0 %v1737
    %1749 = vmatpush.bf16.msra.mxu0 %v1736
    %1750 = vmatpush.bf16.msra.mxu0 %v1735
    %1751 = vmatpush.bf16.msra.mxu0 %v1734
    %1752 = vmatpush.bf16.msra.mxu0 %v1733
    %1753 = vmatpush.bf16.msra.mxu0 %v1732
    %1754 = vmatpush.bf16.msra.mxu0 %v1731
    %1755 = vmatmul.bf16.gmra.mxu0 %v1682
    %v1756 = vpop.f32.mrf.mxu0
    %v1757 = vadd.f32 0.0, %v1756
    %v1758 = vpop.f32.mrf.mxu0
    %1759 = vdwg.mxu0
    %v1760 = vpack.c.bf16 %v1757, %v1757
    %1761 = vst [vmem:[#allocation14] sm:$0xf] %v1760
    // Predicated region
    $region62: #{tpu_custom_call.1} parent=1 // pred_check
      _
    $region63: #{tpu_custom_call.1} parent=1 // pred_check_branch
      %1763 = sbr.rel (0) target = $region65
    $region64: #{tpu_custom_call.1} parent=1 // pred_region
      %1765 = vsyncadd [#allocation4], 0
      %s1767 = sshll.u32 [#allocation14], 4
      %s1768 = int_to_ptr.vmem [resolvable:$true] %s1767
      %s1769 = sshll.u32 %s8, 4
      %s1770 = int_to_ptr.hbm [resolvable:$true] %s1769
      %1772 = dma.vmem_to_hbm [thread:$0]  %s1768, 64, %s1770, [#allocation4]
    $region65: #{tpu_custom_call.1} parent=1 // pred_fallthru
      _
    // Predicated region
    $region66: #{tpu_custom_call.1} parent=1 // pred_check
      _
    $region67: #{tpu_custom_call.1} parent=1 // pred_check_branch
      %1774 = sbr.rel (0) target = $region69
    $region68: #{tpu_custom_call.1} parent=1 // pred_region
      %1776 = dma.done [#allocation4], 64
    $region69: #{tpu_custom_call.1} parent=1 // pred_fallthru
      _
    %1777 = vsyncpa [#allocation3], 1
    %1778 = vsyncpa [#allocation6], 1
    %1779 = vsyncpa [#allocation9], 1
    %1780 = vsyncpa [#allocation12], 1
    %1781 = vsyncpa [#allocation4], 1

</llo_original>
